<compile_context>
chip_gen: v6e
topology: v6e:2x2x1
jax: 0.10.0
libtpu: 0.0.40
codegen_flags: <defaults>
</compile_context>

<pallas_src>
import functools

import jax
import jax.numpy as jnp
from jax.experimental import pallas as pl
from jax.experimental.pallas import tpu as pltpu


def _cdiv(a, b):
    return -(-a // b)


def _tensorcores_per_chip():
    """2 for v7x (grid 'parallel' axes shard across its two TensorCores), else 1."""
    # TODO(synk): use pltpu.get_tpu_info() core count once its field names are
    # stable; device_kind heuristic is sufficient for the tiling decision here.
    try:
        kind = jax.devices()[0].device_kind.lower()
    except Exception:
        return 1
    return 2 if ("v7" in kind or "7x" in kind) else 1


def _make_nf_kernel(nlayers: int, half: int, cells: int, scale_value: float):
    C = cells

    def kernel(z_ref, aux_ref, w1x_all, b1_all, w1u, w2, b2, w3, b3, out_ref):
        # (tile_b, D)/(tile_b, A) blocks in; compute in (features, batch) layout
        # so VPU/EUP work and the matmul N dimension are lane-dense.
        zt = z_ref[...].astype(jnp.float32).T          # (D, Bt)
        auxt = aux_ref[...].T.astype(jnp.bfloat16)     # (A, Bt)
        z1 = zt[:half, :]
        z2 = zt[half:, :]

        # Hoisted: aux contribution (+ first-layer bias) of ALL 2L first layers
        # in one M=2L*C matmul, outside the serial z1->z2 dependency chain.
        aux_part = (jnp.dot(w1x_all[...], auxt, preferred_element_type=jnp.float32)
                    + b1_all[...])                     # (2L*C, Bt)

        def mlp(u, f):
            h = (jnp.dot(w1u[f], u.astype(jnp.bfloat16),
                         preferred_element_type=jnp.float32)
                 + aux_part[f * C:(f + 1) * C, :])
            h = jnp.maximum(h, 0.0).astype(jnp.bfloat16)
            h = jnp.dot(w2[f], h, preferred_element_type=jnp.float32) + b2[f]
            h = jnp.maximum(h, 0.0).astype(jnp.bfloat16)
            # Single fused third-layer matmul; split at the aligned row `half`.
            st = jnp.dot(w3[f], h, preferred_element_type=jnp.float32) + b3[f]
            return st[:half, :], st[half:, :]

        # TODO(synk): for large nlayers switch to lax.fori_loop over the stacked
        # (2L, ...) weights; static unroll is fine for the small L used here.
        for l in range(nlayers):
            s_raw, t = mlp(z2, 2 * l)
            z1 = z1 * jnp.exp(scale_value * jnp.tanh(s_raw)) + t
            s_raw, t = mlp(z1, 2 * l + 1)
            z2 = z2 * jnp.exp(scale_value * jnp.tanh(s_raw)) + t

        # Two direct stores (no concat materialization); transpose of the small
        # D=32-wide tiles is cheap XLU work riding under the MXU-bound body.
        out_ref[:, :half] = z1.T.astype(out_ref.dtype)
        out_ref[:, half:] = z2.T.astype(out_ref.dtype)

    return kernel


def _prep_params(params, half):
    """Stack a/b sides & layers, transpose for (features, batch) compute."""
    L, _, C = params["wa2"].shape
    A = params["wa1x"].shape[1]

    def stack_ab(a, b):
        # flow index f = 2*l + side  (side 0 = 'a', 1 = 'b')
        return jnp.stack([a, b], axis=1).reshape((2 * a.shape[0],) + a.shape[1:])

    def wt(x):  # weight: transpose last two dims, bf16 for the MXU
        return jnp.swapaxes(x, -1, -2).astype(jnp.bfloat16)

    def bt(x):  # bias: transpose last two dims, keep f32
        return jnp.swapaxes(x, -1, -2).astype(jnp.float32)

    w1x_all = wt(stack_ab(params["wa1x"], params["wb1x"])).reshape(2 * L * C, A)
    b1_all = bt(stack_ab(params["ba1"], params["bb1"])).reshape(2 * L * C, 1)
    w1u = wt(stack_ab(params["wa1z"], params["wb1z"]))     # (2L, C, half)
    w2 = wt(stack_ab(params["wa2"], params["wb2"]))        # (2L, C, C)
    b2 = bt(stack_ab(params["ba2"], params["bb2"]))        # (2L, C, 1)
    w3 = wt(stack_ab(params["wa3"], params["wb3"]))        # (2L, 2*half, C)
    b3 = bt(stack_ab(params["ba3"], params["bb3"]))        # (2L, 2*half, 1)
    return [w1x_all, b1_all, w1u, w2, b2, w3, b3]


def nf_forward_pallas(z, aux, params, *, scale_value=0.1, tile_b=2048):
    B, D = z.shape
    A = aux.shape[1]
    half = D // 2
    L, _, C = params["wa2"].shape

    # Lane-multiple batch tiles.  A batch that fits gets a single tile; only
    # dual-TensorCore chips (v7x) benefit from splitting it into >=2 "parallel"
    # grid steps — on v5e/v6e the grid is a sequential loop.
    lane = 128
    tile_b = max(lane, (tile_b // lane) * lane)
    b_lane = _cdiv(B, lane) * lane
    if b_lane <= tile_b:
        if _tensorcores_per_chip() >= 2 and b_lane >= 2 * lane:
            tile_b = _cdiv(b_lane // 2, lane) * lane
        else:
            tile_b = b_lane
    n_tiles = _cdiv(B, tile_b)
    Bp = n_tiles * tile_b

    # Only ragged batches pay a pad; no wrapper-side transposes.
    zp = z if Bp == B else jnp.pad(z, ((0, Bp - B), (0, 0)))
    auxp = aux if Bp == B else jnp.pad(aux, ((0, Bp - B), (0, 0)))

    flat = _prep_params(params, half)
    kernel = _make_nf_kernel(L, half, C, scale_value)

    in_specs = [
        pl.BlockSpec((tile_b, D), lambda i: (i, 0)),
        pl.BlockSpec((tile_b, A), lambda i: (i, 0)),
    ] + [
        # Constant index maps -> weights stay resident across the grid.
        pl.BlockSpec(p.shape, lambda i, n=p.ndim: (0,) * n) for p in flat
    ]
    out_specs = pl.BlockSpec((tile_b, D), lambda i: (i, 0))

    out = pl.pallas_call(
        kernel,
        out_shape=jax.ShapeDtypeStruct((Bp, D), z.dtype),
        grid=(n_tiles,),
        in_specs=in_specs,
        out_specs=out_specs,
        compiler_params=pltpu.CompilerParams(
            dimension_semantics=("parallel",)),
    )(zp, auxp, *flat)

    return out if Bp == B else out[:B]


def nf_forward_ref(z, aux, params, *, scale_value=0.1, bf16_matmul=True):
    """Plain-JAX reference; mirrors the kernel's bf16-matmul / f32-accumulate numerics."""
    D = z.shape[-1]
    half = D // 2
    z1, z2 = z[:, :half].astype(jnp.float32), z[:, half:].astype(jnp.float32)
    aux_f = aux.astype(jnp.float32)

    def mm(a, b):
        if bf16_matmul:
            a = a.astype(jnp.bfloat16)
            b = b.astype(jnp.bfloat16)
        return jnp.dot(a, b, preferred_element_type=jnp.float32)

    def mlp(u, w1u, w1x, b1, w2, b2, w3, b3):
        h = mm(u, w1u) + (mm(aux_f, w1x) + b1)
        h = jnp.maximum(h, 0.0)
        h = jnp.maximum(mm(h, w2) + b2, 0.0)
        return mm(h, w3) + b3

    L = params["wa1z"].shape[0]
    for l in range(L):
        st = mlp(z2, params["wa1z"][l], params["wa1x"][l], params["ba1"][l],
                 params["wa2"][l], params["ba2"][l], params["wa3"][l], params["ba3"][l])
        z1 = z1 * jnp.exp(scale_value * jnp.tanh(st[:, :half])) + st[:, half:]
        st = mlp(z1, params["wb1z"][l], params["wb1x"][l], params["bb1"][l],
                 params["wb2"][l], params["bb2"][l], params["wb3"][l], params["bb3"][l])
        z2 = z2 * jnp.exp(scale_value * jnp.tanh(st[:, :half])) + st[:, half:]
    return jnp.concatenate([z1, z2], axis=-1)


def init_params(key, *, nlayers, latent_size, aux_size, cells):
    half = latent_size // 2
    keys = jax.random.split(key, 14)

    def w(k, shape, fan_in):
        return jax.random.normal(k, shape, jnp.float32) / jnp.sqrt(fan_in)

    return {
        "wa1z": w(keys[0], (nlayers, half, cells), half + aux_size),
        "wa1x": w(keys[1], (nlayers, aux_size, cells), half + aux_size),
        "ba1": 0.01 * jax.random.normal(keys[2], (nlayers, 1, cells), jnp.float32),
        "wa2": w(keys[3], (nlayers, cells, cells), cells),
        "ba2": 0.01 * jax.random.normal(keys[4], (nlayers, 1, cells), jnp.float32),
        "wa3": w(keys[5], (nlayers, cells, 2 * half), cells),
        "ba3": 0.01 * jax.random.normal(keys[6], (nlayers, 1, 2 * half), jnp.float32),
        "wb1z": w(keys[7], (nlayers, half, cells), half + aux_size),
        "wb1x": w(keys[8], (nlayers, aux_size, cells), half + aux_size),
        "bb1": 0.01 * jax.random.normal(keys[9], (nlayers, 1, cells), jnp.float32),
        "wb2": w(keys[10], (nlayers, cells, cells), cells),
        "bb2": 0.01 * jax.random.normal(keys[11], (nlayers, 1, cells), jnp.float32),
        "wb3": w(keys[12], (nlayers, cells, 2 * half), cells),
        "bb3": 0.01 * jax.random.normal(keys[13], (nlayers, 1, 2 * half), jnp.float32),
    }


if __name__ == "__main__":
    # Config consistent with NF(input_size=16, latent_size=32, nlayers=2,
    # sub_network_layers=3, sub_network_cells=32, scaled=True, scale_value=0.1)
    batch = 8
    input_size = 16      # auxiliary conditioning size
    latent_size = 32
    nlayers = 2
    cells = 32
    scale_value = 0.1

    key = jax.random.PRNGKey(0)
    kz, kx, kp = jax.random.split(key, 3)
    z = jax.random.normal(kz, (batch, latent_size), jnp.float32)
    aux = jax.random.normal(kx, (batch, input_size), jnp.float32)
    params = init_params(kp, nlayers=nlayers, latent_size=latent_size,
                         aux_size=input_size, cells=cells)

    # Fuse the (rare) pad / final slice into the surrounding jit.
    fwd = jax.jit(functools.partial(nf_forward_pallas, scale_value=scale_value))

    out = jax.block_until_ready(fwd(z, aux, params))
    ref = nf_forward_ref(z, aux, params, scale_value=scale_value)
    assert out.shape == (batch, latent_size)
    assert jnp.allclose(out, ref, rtol=1e-3, atol=1e-3), (
        float(jnp.max(jnp.abs(out - ref))))

    # Ragged batch, default (large) tile: single-tile path.
    batch_big = 300
    z_big = jax.random.normal(jax.random.PRNGKey(1), (batch_big, latent_size), jnp.float32)
    aux_big = jax.random.normal(jax.random.PRNGKey(2), (batch_big, input_size), jnp.float32)
    ref_big = nf_forward_ref(z_big, aux_big, params, scale_value=scale_value)

    out_big = jax.block_until_ready(fwd(z_big, aux_big, params))
    assert out_big.shape == (batch_big, latent_size)
    assert jnp.allclose(out_big, ref_big, rtol=1e-3, atol=1e-3), (
        float(jnp.max(jnp.abs(out_big - ref_big))))

    # Same ragged batch with a forced small tile: exercises a multi-step
    # "parallel" grid and the padded final tile.
    fwd_small = jax.jit(functools.partial(
        nf_forward_pallas, scale_value=scale_value, tile_b=128))
    out_big2 = jax.block_until_ready(fwd_small(z_big, aux_big, params))
    assert out_big2.shape == (batch_big, latent_size)
    assert jnp.allclose(out_big2, ref_big, rtol=1e-3, atol=1e-3), (
        float(jnp.max(jnp.abs(out_big2 - ref_big))))

    print("KERNEL_OK")
</pallas_src>

<mosaic_0001>
module attributes {stable_mosaic.version = 11 : i64} {
  func.func @kernel(%arg0: i32, %arg1: memref<128x32xf32, #tpu.memory_space<vmem>>, %arg2: memref<128x16xf32, #tpu.memory_space<vmem>>, %arg3: memref<128x16xbf16, #tpu.memory_space<vmem>>, %arg4: memref<128x1xf32, #tpu.memory_space<vmem>>, %arg5: memref<4x32x16xbf16, #tpu.memory_space<vmem>>, %arg6: memref<4x32x32xbf16, #tpu.memory_space<vmem>>, %arg7: memref<4x32x1xf32, #tpu.memory_space<vmem>>, %arg8: memref<4x32x32xbf16, #tpu.memory_space<vmem>>, %arg9: memref<4x32x1xf32, #tpu.memory_space<vmem>>, %arg10: memref<128x32xf32, #tpu.memory_space<vmem>>) attributes {dimension_semantics = [#tpu.dimension_semantics<parallel>], iteration_bounds = array<i64: 1>, scalar_prefetch = 0 : i64, scratch_operands = 0 : i64, tpu.core_type = #tpu.core_type<tc>, window_params = [{transform_indices = @transform_0, window_bounds = array<i64: 128, 32>}, {transform_indices = @transform_1, window_bounds = array<i64: 128, 16>}, {pipeline_mode = #tpu.pipeline_mode<synchronous>, transform_indices = @transform_2, window_bounds = array<i64: 128, 16>}, {pipeline_mode = #tpu.pipeline_mode<synchronous>, transform_indices = @transform_3, window_bounds = array<i64: 128, 1>}, {pipeline_mode = #tpu.pipeline_mode<synchronous>, transform_indices = @transform_4, window_bounds = array<i64: 4, 32, 16>}, {pipeline_mode = #tpu.pipeline_mode<synchronous>, transform_indices = @transform_5, window_bounds = array<i64: 4, 32, 32>}, {pipeline_mode = #tpu.pipeline_mode<synchronous>, transform_indices = @transform_6, window_bounds = array<i64: 4, 32, 1>}, {pipeline_mode = #tpu.pipeline_mode<synchronous>, transform_indices = @transform_7, window_bounds = array<i64: 4, 32, 32>}, {pipeline_mode = #tpu.pipeline_mode<synchronous>, transform_indices = @transform_8, window_bounds = array<i64: 4, 32, 1>}, {transform_indices = @transform_9, window_bounds = array<i64: 128, 32>}]} {
    %c0 = arith.constant 0 : index
    %c0_0 = arith.constant 0 : index
    %0 = vector.load %arg1[%c0, %c0_0] : memref<128x32xf32, #tpu.memory_space<vmem>>, vector<128x32xf32>
    %1 = tpu.transpose %0, [1, 0] : vector<128x32xf32> -> vector<32x128xf32>
    %c0_1 = arith.constant 0 : index
    %c0_2 = arith.constant 0 : index
    %2 = vector.load %arg2[%c0_1, %c0_2] : memref<128x16xf32, #tpu.memory_space<vmem>>, vector<128x16xf32>
    %3 = tpu.transpose %2, [1, 0] : vector<128x16xf32> -> vector<16x128xf32>
    %4 = arith.truncf %3 : vector<16x128xf32> to vector<16x128xbf16>
    %5 = vector.extract_strided_slice %1 {offsets = [0, 0], sizes = [16, 128], strides = [1, 1]} : vector<32x128xf32> to vector<16x128xf32>
    %6 = vector.extract_strided_slice %1 {offsets = [16, 0], sizes = [16, 128], strides = [1, 1]} : vector<32x128xf32> to vector<16x128xf32>
    %c0_3 = arith.constant 0 : index
    %c0_4 = arith.constant 0 : index
    %7 = vector.load %arg3[%c0_3, %c0_4] : memref<128x16xbf16, #tpu.memory_space<vmem>>, vector<128x16xbf16>
    %cst = arith.constant dense<0.000000e+00> : vector<128x128xf32>
    %8 = tpu.matmul %7, %4, %cst {dimension_numbers = #tpu.dot_dimension_numbers<[1], [0], [0], [1], [0, 0, 1, 1], [], []>} : vector<128x16xbf16>, vector<16x128xbf16>, vector<128x128xf32> -> vector<128x128xf32>
    %c0_5 = arith.constant 0 : index
    %c0_6 = arith.constant 0 : index
    %9 = vector.load %arg4[%c0_5, %c0_6] : memref<128x1xf32, #tpu.memory_space<vmem>>, vector<128x1xf32>
    %10 = vector.broadcast %9 : vector<128x1xf32> to vector<128x128xf32>
    %11 = arith.addf %8, %10 : vector<128x128xf32>
    %c0_7 = arith.constant 0 : index
    %c0_8 = arith.constant 0 : index
    %c0_9 = arith.constant 0 : index
    %12 = vector.load %arg5[%c0_7, %c0_8, %c0_9] : memref<4x32x16xbf16, #tpu.memory_space<vmem>>, vector<1x32x16xbf16>
    %13 = vector.shape_cast %12 : vector<1x32x16xbf16> to vector<32x16xbf16>
    %14 = arith.truncf %6 : vector<16x128xf32> to vector<16x128xbf16>
    %cst_10 = arith.constant dense<0.000000e+00> : vector<32x128xf32>
    %15 = tpu.matmul %13, %14, %cst_10 {dimension_numbers = #tpu.dot_dimension_numbers<[1], [0], [0], [1], [0, 0, 1, 1], [], []>} : vector<32x16xbf16>, vector<16x128xbf16>, vector<32x128xf32> -> vector<32x128xf32>
    %16 = vector.extract_strided_slice %11 {offsets = [0, 0], sizes = [32, 128], strides = [1, 1]} : vector<128x128xf32> to vector<32x128xf32>
    %17 = arith.addf %15, %16 : vector<32x128xf32>
    %cst_11 = arith.constant 0.000000e+00 : f32
    %18 = vector.broadcast %cst_11 : f32 to vector<32x128xf32>
    %19 = arith.maximumf %17, %18 : vector<32x128xf32>
    %20 = arith.truncf %19 : vector<32x128xf32> to vector<32x128xbf16>
    %c0_12 = arith.constant 0 : index
    %c0_13 = arith.constant 0 : index
    %c0_14 = arith.constant 0 : index
    %21 = vector.load %arg6[%c0_12, %c0_13, %c0_14] : memref<4x32x32xbf16, #tpu.memory_space<vmem>>, vector<1x32x32xbf16>
    %22 = vector.shape_cast %21 : vector<1x32x32xbf16> to vector<32x32xbf16>
    %cst_15 = arith.constant dense<0.000000e+00> : vector<32x128xf32>
    %23 = tpu.matmul %22, %20, %cst_15 {dimension_numbers = #tpu.dot_dimension_numbers<[1], [0], [0], [1], [0, 0, 1, 1], [], []>} : vector<32x32xbf16>, vector<32x128xbf16>, vector<32x128xf32> -> vector<32x128xf32>
    %c0_16 = arith.constant 0 : index
    %c0_17 = arith.constant 0 : index
    %c0_18 = arith.constant 0 : index
    %24 = vector.load %arg7[%c0_16, %c0_17, %c0_18] : memref<4x32x1xf32, #tpu.memory_space<vmem>>, vector<1x32x1xf32>
    %25 = vector.shape_cast %24 : vector<1x32x1xf32> to vector<32x1xf32>
    %26 = vector.broadcast %25 : vector<32x1xf32> to vector<32x128xf32>
    %27 = arith.addf %23, %26 : vector<32x128xf32>
    %cst_19 = arith.constant 0.000000e+00 : f32
    %28 = vector.broadcast %cst_19 : f32 to vector<32x128xf32>
    %29 = arith.maximumf %27, %28 : vector<32x128xf32>
    %30 = arith.truncf %29 : vector<32x128xf32> to vector<32x128xbf16>
    %c0_20 = arith.constant 0 : index
    %c0_21 = arith.constant 0 : index
    %c0_22 = arith.constant 0 : index
    %31 = vector.load %arg8[%c0_20, %c0_21, %c0_22] : memref<4x32x32xbf16, #tpu.memory_space<vmem>>, vector<1x32x32xbf16>
    %32 = vector.shape_cast %31 : vector<1x32x32xbf16> to vector<32x32xbf16>
    %cst_23 = arith.constant dense<0.000000e+00> : vector<32x128xf32>
    %33 = tpu.matmul %32, %30, %cst_23 {dimension_numbers = #tpu.dot_dimension_numbers<[1], [0], [0], [1], [0, 0, 1, 1], [], []>} : vector<32x32xbf16>, vector<32x128xbf16>, vector<32x128xf32> -> vector<32x128xf32>
    %c0_24 = arith.constant 0 : index
    %c0_25 = arith.constant 0 : index
    %c0_26 = arith.constant 0 : index
    %34 = vector.load %arg9[%c0_24, %c0_25, %c0_26] : memref<4x32x1xf32, #tpu.memory_space<vmem>>, vector<1x32x1xf32>
    %35 = vector.shape_cast %34 : vector<1x32x1xf32> to vector<32x1xf32>
    %36 = vector.broadcast %35 : vector<32x1xf32> to vector<32x128xf32>
    %37 = arith.addf %33, %36 : vector<32x128xf32>
    %38 = vector.extract_strided_slice %37 {offsets = [0, 0], sizes = [16, 128], strides = [1, 1]} : vector<32x128xf32> to vector<16x128xf32>
    %39 = vector.extract_strided_slice %37 {offsets = [16, 0], sizes = [16, 128], strides = [1, 1]} : vector<32x128xf32> to vector<16x128xf32>
    %40 = math.tanh %38 : vector<16x128xf32>
    %cst_27 = arith.constant 1.000000e-01 : f32
    %41 = vector.broadcast %cst_27 : f32 to vector<16x128xf32>
    %42 = arith.mulf %41, %40 : vector<16x128xf32>
    %43 = math.exp %42 : vector<16x128xf32>
    %44 = arith.mulf %5, %43 : vector<16x128xf32>
    %45 = arith.addf %44, %39 : vector<16x128xf32>
    %c1 = arith.constant 1 : index
    %c0_28 = arith.constant 0 : index
    %c0_29 = arith.constant 0 : index
    %46 = vector.load %arg5[%c1, %c0_28, %c0_29] : memref<4x32x16xbf16, #tpu.memory_space<vmem>>, vector<1x32x16xbf16>
    %47 = vector.shape_cast %46 : vector<1x32x16xbf16> to vector<32x16xbf16>
    %48 = arith.truncf %45 : vector<16x128xf32> to vector<16x128xbf16>
    %cst_30 = arith.constant dense<0.000000e+00> : vector<32x128xf32>
    %49 = tpu.matmul %47, %48, %cst_30 {dimension_numbers = #tpu.dot_dimension_numbers<[1], [0], [0], [1], [0, 0, 1, 1], [], []>} : vector<32x16xbf16>, vector<16x128xbf16>, vector<32x128xf32> -> vector<32x128xf32>
    %50 = vector.extract_strided_slice %11 {offsets = [32, 0], sizes = [32, 128], strides = [1, 1]} : vector<128x128xf32> to vector<32x128xf32>
    %51 = arith.addf %49, %50 : vector<32x128xf32>
    %cst_31 = arith.constant 0.000000e+00 : f32
    %52 = vector.broadcast %cst_31 : f32 to vector<32x128xf32>
    %53 = arith.maximumf %51, %52 : vector<32x128xf32>
    %54 = arith.truncf %53 : vector<32x128xf32> to vector<32x128xbf16>
    %c1_32 = arith.constant 1 : index
    %c0_33 = arith.constant 0 : index
    %c0_34 = arith.constant 0 : index
    %55 = vector.load %arg6[%c1_32, %c0_33, %c0_34] : memref<4x32x32xbf16, #tpu.memory_space<vmem>>, vector<1x32x32xbf16>
    %56 = vector.shape_cast %55 : vector<1x32x32xbf16> to vector<32x32xbf16>
    %cst_35 = arith.constant dense<0.000000e+00> : vector<32x128xf32>
    %57 = tpu.matmul %56, %54, %cst_35 {dimension_numbers = #tpu.dot_dimension_numbers<[1], [0], [0], [1], [0, 0, 1, 1], [], []>} : vector<32x32xbf16>, vector<32x128xbf16>, vector<32x128xf32> -> vector<32x128xf32>
    %c1_36 = arith.constant 1 : index
    %c0_37 = arith.constant 0 : index
    %c0_38 = arith.constant 0 : index
    %58 = vector.load %arg7[%c1_36, %c0_37, %c0_38] : memref<4x32x1xf32, #tpu.memory_space<vmem>>, vector<1x32x1xf32>
    %59 = vector.shape_cast %58 : vector<1x32x1xf32> to vector<32x1xf32>
    %60 = vector.broadcast %59 : vector<32x1xf32> to vector<32x128xf32>
    %61 = arith.addf %57, %60 : vector<32x128xf32>
    %cst_39 = arith.constant 0.000000e+00 : f32
    %62 = vector.broadcast %cst_39 : f32 to vector<32x128xf32>
    %63 = arith.maximumf %61, %62 : vector<32x128xf32>
    %64 = arith.truncf %63 : vector<32x128xf32> to vector<32x128xbf16>
    %c1_40 = arith.constant 1 : index
    %c0_41 = arith.constant 0 : index
    %c0_42 = arith.constant 0 : index
    %65 = vector.load %arg8[%c1_40, %c0_41, %c0_42] : memref<4x32x32xbf16, #tpu.memory_space<vmem>>, vector<1x32x32xbf16>
    %66 = vector.shape_cast %65 : vector<1x32x32xbf16> to vector<32x32xbf16>
    %cst_43 = arith.constant dense<0.000000e+00> : vector<32x128xf32>
    %67 = tpu.matmul %66, %64, %cst_43 {dimension_numbers = #tpu.dot_dimension_numbers<[1], [0], [0], [1], [0, 0, 1, 1], [], []>} : vector<32x32xbf16>, vector<32x128xbf16>, vector<32x128xf32> -> vector<32x128xf32>
    %c1_44 = arith.constant 1 : index
    %c0_45 = arith.constant 0 : index
    %c0_46 = arith.constant 0 : index
    %68 = vector.load %arg9[%c1_44, %c0_45, %c0_46] : memref<4x32x1xf32, #tpu.memory_space<vmem>>, vector<1x32x1xf32>
    %69 = vector.shape_cast %68 : vector<1x32x1xf32> to vector<32x1xf32>
    %70 = vector.broadcast %69 : vector<32x1xf32> to vector<32x128xf32>
    %71 = arith.addf %67, %70 : vector<32x128xf32>
    %72 = vector.extract_strided_slice %71 {offsets = [0, 0], sizes = [16, 128], strides = [1, 1]} : vector<32x128xf32> to vector<16x128xf32>
    %73 = vector.extract_strided_slice %71 {offsets = [16, 0], sizes = [16, 128], strides = [1, 1]} : vector<32x128xf32> to vector<16x128xf32>
    %74 = math.tanh %72 : vector<16x128xf32>
    %cst_47 = arith.constant 1.000000e-01 : f32
    %75 = vector.broadcast %cst_47 : f32 to vector<16x128xf32>
    %76 = arith.mulf %75, %74 : vector<16x128xf32>
    %77 = math.exp %76 : vector<16x128xf32>
    %78 = arith.mulf %6, %77 : vector<16x128xf32>
    %79 = arith.addf %78, %73 : vector<16x128xf32>
    %c2 = arith.constant 2 : index
    %c0_48 = arith.constant 0 : index
    %c0_49 = arith.constant 0 : index
    %80 = vector.load %arg5[%c2, %c0_48, %c0_49] : memref<4x32x16xbf16, #tpu.memory_space<vmem>>, vector<1x32x16xbf16>
    %81 = vector.shape_cast %80 : vector<1x32x16xbf16> to vector<32x16xbf16>
    %82 = arith.truncf %79 : vector<16x128xf32> to vector<16x128xbf16>
    %cst_50 = arith.constant dense<0.000000e+00> : vector<32x128xf32>
    %83 = tpu.matmul %81, %82, %cst_50 {dimension_numbers = #tpu.dot_dimension_numbers<[1], [0], [0], [1], [0, 0, 1, 1], [], []>} : vector<32x16xbf16>, vector<16x128xbf16>, vector<32x128xf32> -> vector<32x128xf32>
    %84 = vector.extract_strided_slice %11 {offsets = [64, 0], sizes = [32, 128], strides = [1, 1]} : vector<128x128xf32> to vector<32x128xf32>
    %85 = arith.addf %83, %84 : vector<32x128xf32>
    %cst_51 = arith.constant 0.000000e+00 : f32
    %86 = vector.broadcast %cst_51 : f32 to vector<32x128xf32>
    %87 = arith.maximumf %85, %86 : vector<32x128xf32>
    %88 = arith.truncf %87 : vector<32x128xf32> to vector<32x128xbf16>
    %c2_52 = arith.constant 2 : index
    %c0_53 = arith.constant 0 : index
    %c0_54 = arith.constant 0 : index
    %89 = vector.load %arg6[%c2_52, %c0_53, %c0_54] : memref<4x32x32xbf16, #tpu.memory_space<vmem>>, vector<1x32x32xbf16>
    %90 = vector.shape_cast %89 : vector<1x32x32xbf16> to vector<32x32xbf16>
    %cst_55 = arith.constant dense<0.000000e+00> : vector<32x128xf32>
    %91 = tpu.matmul %90, %88, %cst_55 {dimension_numbers = #tpu.dot_dimension_numbers<[1], [0], [0], [1], [0, 0, 1, 1], [], []>} : vector<32x32xbf16>, vector<32x128xbf16>, vector<32x128xf32> -> vector<32x128xf32>
    %c2_56 = arith.constant 2 : index
    %c0_57 = arith.constant 0 : index
    %c0_58 = arith.constant 0 : index
    %92 = vector.load %arg7[%c2_56, %c0_57, %c0_58] : memref<4x32x1xf32, #tpu.memory_space<vmem>>, vector<1x32x1xf32>
    %93 = vector.shape_cast %92 : vector<1x32x1xf32> to vector<32x1xf32>
    %94 = vector.broadcast %93 : vector<32x1xf32> to vector<32x128xf32>
    %95 = arith.addf %91, %94 : vector<32x128xf32>
    %cst_59 = arith.constant 0.000000e+00 : f32
    %96 = vector.broadcast %cst_59 : f32 to vector<32x128xf32>
    %97 = arith.maximumf %95, %96 : vector<32x128xf32>
    %98 = arith.truncf %97 : vector<32x128xf32> to vector<32x128xbf16>
    %c2_60 = arith.constant 2 : index
    %c0_61 = arith.constant 0 : index
    %c0_62 = arith.constant 0 : index
    %99 = vector.load %arg8[%c2_60, %c0_61, %c0_62] : memref<4x32x32xbf16, #tpu.memory_space<vmem>>, vector<1x32x32xbf16>
    %100 = vector.shape_cast %99 : vector<1x32x32xbf16> to vector<32x32xbf16>
    %cst_63 = arith.constant dense<0.000000e+00> : vector<32x128xf32>
    %101 = tpu.matmul %100, %98, %cst_63 {dimension_numbers = #tpu.dot_dimension_numbers<[1], [0], [0], [1], [0, 0, 1, 1], [], []>} : vector<32x32xbf16>, vector<32x128xbf16>, vector<32x128xf32> -> vector<32x128xf32>
    %c2_64 = arith.constant 2 : index
    %c0_65 = arith.constant 0 : index
    %c0_66 = arith.constant 0 : index
    %102 = vector.load %arg9[%c2_64, %c0_65, %c0_66] : memref<4x32x1xf32, #tpu.memory_space<vmem>>, vector<1x32x1xf32>
    %103 = vector.shape_cast %102 : vector<1x32x1xf32> to vector<32x1xf32>
    %104 = vector.broadcast %103 : vector<32x1xf32> to vector<32x128xf32>
    %105 = arith.addf %101, %104 : vector<32x128xf32>
    %106 = vector.extract_strided_slice %105 {offsets = [0, 0], sizes = [16, 128], strides = [1, 1]} : vector<32x128xf32> to vector<16x128xf32>
    %107 = vector.extract_strided_slice %105 {offsets = [16, 0], sizes = [16, 128], strides = [1, 1]} : vector<32x128xf32> to vector<16x128xf32>
    %108 = math.tanh %106 : vector<16x128xf32>
    %cst_67 = arith.constant 1.000000e-01 : f32
    %109 = vector.broadcast %cst_67 : f32 to vector<16x128xf32>
    %110 = arith.mulf %109, %108 : vector<16x128xf32>
    %111 = math.exp %110 : vector<16x128xf32>
    %112 = arith.mulf %45, %111 : vector<16x128xf32>
    %113 = arith.addf %112, %107 : vector<16x128xf32>
    %c3 = arith.constant 3 : index
    %c0_68 = arith.constant 0 : index
    %c0_69 = arith.constant 0 : index
    %114 = vector.load %arg5[%c3, %c0_68, %c0_69] : memref<4x32x16xbf16, #tpu.memory_space<vmem>>, vector<1x32x16xbf16>
    %115 = vector.shape_cast %114 : vector<1x32x16xbf16> to vector<32x16xbf16>
    %116 = arith.truncf %113 : vector<16x128xf32> to vector<16x128xbf16>
    %cst_70 = arith.constant dense<0.000000e+00> : vector<32x128xf32>
    %117 = tpu.matmul %115, %116, %cst_70 {dimension_numbers = #tpu.dot_dimension_numbers<[1], [0], [0], [1], [0, 0, 1, 1], [], []>} : vector<32x16xbf16>, vector<16x128xbf16>, vector<32x128xf32> -> vector<32x128xf32>
    %118 = vector.extract_strided_slice %11 {offsets = [96, 0], sizes = [32, 128], strides = [1, 1]} : vector<128x128xf32> to vector<32x128xf32>
    %119 = arith.addf %117, %118 : vector<32x128xf32>
    %cst_71 = arith.constant 0.000000e+00 : f32
    %120 = vector.broadcast %cst_71 : f32 to vector<32x128xf32>
    %121 = arith.maximumf %119, %120 : vector<32x128xf32>
    %122 = arith.truncf %121 : vector<32x128xf32> to vector<32x128xbf16>
    %c3_72 = arith.constant 3 : index
    %c0_73 = arith.constant 0 : index
    %c0_74 = arith.constant 0 : index
    %123 = vector.load %arg6[%c3_72, %c0_73, %c0_74] : memref<4x32x32xbf16, #tpu.memory_space<vmem>>, vector<1x32x32xbf16>
    %124 = vector.shape_cast %123 : vector<1x32x32xbf16> to vector<32x32xbf16>
    %cst_75 = arith.constant dense<0.000000e+00> : vector<32x128xf32>
    %125 = tpu.matmul %124, %122, %cst_75 {dimension_numbers = #tpu.dot_dimension_numbers<[1], [0], [0], [1], [0, 0, 1, 1], [], []>} : vector<32x32xbf16>, vector<32x128xbf16>, vector<32x128xf32> -> vector<32x128xf32>
    %c3_76 = arith.constant 3 : index
    %c0_77 = arith.constant 0 : index
    %c0_78 = arith.constant 0 : index
    %126 = vector.load %arg7[%c3_76, %c0_77, %c0_78] : memref<4x32x1xf32, #tpu.memory_space<vmem>>, vector<1x32x1xf32>
    %127 = vector.shape_cast %126 : vector<1x32x1xf32> to vector<32x1xf32>
    %128 = vector.broadcast %127 : vector<32x1xf32> to vector<32x128xf32>
    %129 = arith.addf %125, %128 : vector<32x128xf32>
    %cst_79 = arith.constant 0.000000e+00 : f32
    %130 = vector.broadcast %cst_79 : f32 to vector<32x128xf32>
    %131 = arith.maximumf %129, %130 : vector<32x128xf32>
    %132 = arith.truncf %131 : vector<32x128xf32> to vector<32x128xbf16>
    %c3_80 = arith.constant 3 : index
    %c0_81 = arith.constant 0 : index
    %c0_82 = arith.constant 0 : index
    %133 = vector.load %arg8[%c3_80, %c0_81, %c0_82] : memref<4x32x32xbf16, #tpu.memory_space<vmem>>, vector<1x32x32xbf16>
    %134 = vector.shape_cast %133 : vector<1x32x32xbf16> to vector<32x32xbf16>
    %cst_83 = arith.constant dense<0.000000e+00> : vector<32x128xf32>
    %135 = tpu.matmul %134, %132, %cst_83 {dimension_numbers = #tpu.dot_dimension_numbers<[1], [0], [0], [1], [0, 0, 1, 1], [], []>} : vector<32x32xbf16>, vector<32x128xbf16>, vector<32x128xf32> -> vector<32x128xf32>
    %c3_84 = arith.constant 3 : index
    %c0_85 = arith.constant 0 : index
    %c0_86 = arith.constant 0 : index
    %136 = vector.load %arg9[%c3_84, %c0_85, %c0_86] : memref<4x32x1xf32, #tpu.memory_space<vmem>>, vector<1x32x1xf32>
    %137 = vector.shape_cast %136 : vector<1x32x1xf32> to vector<32x1xf32>
    %138 = vector.broadcast %137 : vector<32x1xf32> to vector<32x128xf32>
    %139 = arith.addf %135, %138 : vector<32x128xf32>
    %140 = vector.extract_strided_slice %139 {offsets = [0, 0], sizes = [16, 128], strides = [1, 1]} : vector<32x128xf32> to vector<16x128xf32>
    %141 = vector.extract_strided_slice %139 {offsets = [16, 0], sizes = [16, 128], strides = [1, 1]} : vector<32x128xf32> to vector<16x128xf32>
    %142 = math.tanh %140 : vector<16x128xf32>
    %cst_87 = arith.constant 1.000000e-01 : f32
    %143 = vector.broadcast %cst_87 : f32 to vector<16x128xf32>
    %144 = arith.mulf %143, %142 : vector<16x128xf32>
    %145 = math.exp %144 : vector<16x128xf32>
    %146 = arith.mulf %79, %145 : vector<16x128xf32>
    %147 = arith.addf %146, %141 : vector<16x128xf32>
    %148 = tpu.transpose %113, [1, 0] : vector<16x128xf32> -> vector<128x16xf32>
    %c0_88 = arith.constant 0 : index
    %c0_89 = arith.constant 0 : index
    %149 = vector.load %arg10[%c0_88, %c0_89] : memref<128x32xf32, #tpu.memory_space<vmem>>, vector<128x16xf32>
    tpu.vector_store %arg10[%c0_88, %c0_89], %148 {strides = array<i32>} : memref<128x32xf32, #tpu.memory_space<vmem>>, vector<128x16xf32>,
    %150 = tpu.transpose %147, [1, 0] : vector<16x128xf32> -> vector<128x16xf32>
    %c0_90 = arith.constant 0 : index
    %c16 = arith.constant 16 : index
    %151 = vector.load %arg10[%c0_90, %c16] : memref<128x32xf32, #tpu.memory_space<vmem>>, vector<128x16xf32>
    tpu.vector_store %arg10[%c0_90, %c16], %150 {strides = array<i32>} : memref<128x32xf32, #tpu.memory_space<vmem>>, vector<128x16xf32>,
    return
  }
  func.func @transform_0(%arg0: i32) -> (i32, i32) {
    %c0_i32 = arith.constant 0 : i32
    %c0_i32_0 = arith.constant 0 : i32
    return %arg0, %c0_i32 : i32, i32
  }
  func.func @transform_1(%arg0: i32) -> (i32, i32) {
    %c0_i32 = arith.constant 0 : i32
    %c0_i32_0 = arith.constant 0 : i32
    return %arg0, %c0_i32 : i32, i32
  }
  func.func @transform_2(%arg0: i32) -> (i32, i32) {
    %c0_i32 = arith.constant 0 : i32
    %c0_i32_0 = arith.constant 0 : i32
    %c0_i32_1 = arith.constant 0 : i32
    return %c0_i32, %c0_i32_0 : i32, i32
  }
  func.func @transform_3(%arg0: i32) -> (i32, i32) {
    %c0_i32 = arith.constant 0 : i32
    %c0_i32_0 = arith.constant 0 : i32
    %c0_i32_1 = arith.constant 0 : i32
    return %c0_i32, %c0_i32_0 : i32, i32
  }
  func.func @transform_4(%arg0: i32) -> (i32, i32, i32) {
    %c0_i32 = arith.constant 0 : i32
    %c0_i32_0 = arith.constant 0 : i32
    %c0_i32_1 = arith.constant 0 : i32
    %c0_i32_2 = arith.constant 0 : i32
    return %c0_i32, %c0_i32_0, %c0_i32_1 : i32, i32, i32
  }
  func.func @transform_5(%arg0: i32) -> (i32, i32, i32) {
    %c0_i32 = arith.constant 0 : i32
    %c0_i32_0 = arith.constant 0 : i32
    %c0_i32_1 = arith.constant 0 : i32
    %c0_i32_2 = arith.constant 0 : i32
    return %c0_i32, %c0_i32_0, %c0_i32_1 : i32, i32, i32
  }
  func.func @transform_6(%arg0: i32) -> (i32, i32, i32) {
    %c0_i32 = arith.constant 0 : i32
    %c0_i32_0 = arith.constant 0 : i32
    %c0_i32_1 = arith.constant 0 : i32
    %c0_i32_2 = arith.constant 0 : i32
    return %c0_i32, %c0_i32_0, %c0_i32_1 : i32, i32, i32
  }
  func.func @transform_7(%arg0: i32) -> (i32, i32, i32) {
    %c0_i32 = arith.constant 0 : i32
    %c0_i32_0 = arith.constant 0 : i32
    %c0_i32_1 = arith.constant 0 : i32
    %c0_i32_2 = arith.constant 0 : i32
    return %c0_i32, %c0_i32_0, %c0_i32_1 : i32, i32, i32
  }
  func.func @transform_8(%arg0: i32) -> (i32, i32, i32) {
    %c0_i32 = arith.constant 0 : i32
    %c0_i32_0 = arith.constant 0 : i32
    %c0_i32_1 = arith.constant 0 : i32
    %c0_i32_2 = arith.constant 0 : i32
    return %c0_i32, %c0_i32_0, %c0_i32_1 : i32, i32, i32
  }
  func.func @transform_9(%arg0: i32) -> (i32, i32) {
    %c0_i32 = arith.constant 0 : i32
    %c0_i32_0 = arith.constant 0 : i32
    return %arg0, %c0_i32 : i32, i32
  }
}

</mosaic_0001>

<llo_original>
// kernel: nf_forward_pallas.1
$region0: #{nf_forward_pallas.1}
  #allocation0 [shape = 'u32[]', space=smem, size = 0x4, offset = 0x4, fixed_abs, tag = 'smem constant byte address 0x4 - core index']
  #allocation1 [shape = 'u32[144,128]{1,0:T(1,128)}', space=vmem, size = 0x12000, scoped, tag = 'internal scratch']
  %s0 = inlined_call_operand.vmem [shape: f32[128,32], index: 0, kind: input, shape index: {}]
  %s1 = inlined_call_operand.vmem [shape: f32[128,16], index: 1, kind: input, shape index: {}]
  %s2 = inlined_call_operand.vmem [shape: bf16[128,16], index: 2, kind: input, shape index: {}]
  %s3 = inlined_call_operand.vmem [shape: f32[128,1], index: 3, kind: input, shape index: {}]
  %s4 = inlined_call_operand.vmem [shape: bf16[4,32,16], index: 4, kind: input, shape index: {}]
  %s5 = inlined_call_operand.vmem [shape: bf16[4,32,32], index: 5, kind: input, shape index: {}]
  %s6 = inlined_call_operand.vmem [shape: f32[4,32,1], index: 6, kind: input, shape index: {}]
  %s7 = inlined_call_operand.vmem [shape: bf16[4,32,32], index: 7, kind: input, shape index: {}]
  %s8 = inlined_call_operand.vmem [shape: f32[4,32,1], index: 8, kind: input, shape index: {}]
  %s9 = inlined_call_operand.vmem [shape: f32[128,32], index: 9, kind: output, shape index: {}]
  %s10 = sld [smem:[#allocation0]]
  $region46: #{nf_forward_pallas.1} parent=0
    _
  %s12 = ssub.s32 1, %s10
  %s13 = scalar_select 0, %s12, %s10
  // Predicated region
  $region2: #{nf_forward_pallas.1} parent=0 // pred_check
    _
  $region3: #{nf_forward_pallas.1} parent=0 // pred_check_branch
    %15 = sbr.rel (0) target = $region5
  $region4: #{nf_forward_pallas.1} parent=0 // pred_region
    _
  $region5: #{nf_forward_pallas.1} parent=0 // pred_fallthru
    _
  // Predicated region
  $region6: #{nf_forward_pallas.1} parent=0 // pred_check
    _
  $region7: #{nf_forward_pallas.1} parent=0 // pred_check_branch
    %17 = sbr.rel (0) target = $region9
  $region8: #{nf_forward_pallas.1} parent=0 // pred_region
    _
  $region9: #{nf_forward_pallas.1} parent=0 // pred_fallthru
    _
  // Predicated region
  $region10: #{nf_forward_pallas.1} parent=0 // pred_check
    _
  $region11: #{nf_forward_pallas.1} parent=0 // pred_check_branch
    %19 = sbr.rel (0) target = $region13
  $region12: #{nf_forward_pallas.1} parent=0 // pred_region
    _
  $region13: #{nf_forward_pallas.1} parent=0 // pred_fallthru
    _
  // Predicated region
  $region14: #{nf_forward_pallas.1} parent=0 // pred_check
    _
  $region15: #{nf_forward_pallas.1} parent=0 // pred_check_branch
    %21 = sbr.rel (0) target = $region17
  $region16: #{nf_forward_pallas.1} parent=0 // pred_region
    _
  $region17: #{nf_forward_pallas.1} parent=0 // pred_fallthru
    _
  // Predicated region
  $region18: #{nf_forward_pallas.1} parent=0 // pred_check
    _
  $region19: #{nf_forward_pallas.1} parent=0 // pred_check_branch
    %23 = sbr.rel (0) target = $region21
  $region20: #{nf_forward_pallas.1} parent=0 // pred_region
    _
  $region21: #{nf_forward_pallas.1} parent=0 // pred_fallthru
    _
  // Predicated region
  $region22: #{nf_forward_pallas.1} parent=0 // pred_check
    _
  $region23: #{nf_forward_pallas.1} parent=0 // pred_check_branch
    %25 = sbr.rel (0) target = $region25
  $region24: #{nf_forward_pallas.1} parent=0 // pred_region
    _
  $region25: #{nf_forward_pallas.1} parent=0 // pred_fallthru
    _
  // Predicated region
  $region26: #{nf_forward_pallas.1} parent=0 // pred_check
    _
  $region27: #{nf_forward_pallas.1} parent=0 // pred_check_branch
    %27 = sbr.rel (0) target = $region29
  $region28: #{nf_forward_pallas.1} parent=0 // pred_region
    _
  $region29: #{nf_forward_pallas.1} parent=0 // pred_fallthru
    _
  // Predicated region
  $region30: #{nf_forward_pallas.1} parent=0 // pred_check
    _
  $region31: #{nf_forward_pallas.1} parent=0 // pred_check_branch
    %29 = sbr.rel (0) target = $region33
  $region32: #{nf_forward_pallas.1} parent=0 // pred_region
    _
  $region33: #{nf_forward_pallas.1} parent=0 // pred_fallthru
    _
  // Predicated region
  $region34: #{nf_forward_pallas.1} parent=0 // pred_check
    _
  $region35: #{nf_forward_pallas.1} parent=0 // pred_check_branch
    %31 = sbr.rel (0) target = $region37
  $region36: #{nf_forward_pallas.1} parent=0 // pred_region
    _
  $region37: #{nf_forward_pallas.1} parent=0 // pred_fallthru
    _
  %v33 = vld [vmem:[%s0] sm:$0xff]
  %v34 = vld [vmem:[%s0 + $0x8] sm:$0xff]
  %v35 = vld [vmem:[%s0 + $0x10] sm:$0xff]
  %v36 = vld [vmem:[%s0 + $0x18] sm:$0xff]
  %v37 = vld [vmem:[%s0 + $0x20] sm:$0xff]
  %v38 = vld [vmem:[%s0 + $0x28] sm:$0xff]
  %v39 = vld [vmem:[%s0 + $0x30] sm:$0xff]
  %v40 = vld [vmem:[%s0 + $0x38] sm:$0xff]
  %v41 = vld [vmem:[%s0 + $0x40] sm:$0xff]
  %v42 = vld [vmem:[%s0 + $0x48] sm:$0xff]
  %v43 = vld [vmem:[%s0 + $0x50] sm:$0xff]
  %v44 = vld [vmem:[%s0 + $0x58] sm:$0xff]
  %v45 = vld [vmem:[%s0 + $0x60] sm:$0xff]
  %v46 = vld [vmem:[%s0 + $0x68] sm:$0xff]
  %v47 = vld [vmem:[%s0 + $0x70] sm:$0xff]
  %v48 = vld [vmem:[%s0 + $0x78] sm:$0xff]
  %49 = vxpose.xlu0.b32.start [1/16] %v33, 128
  %50 = vxpose.xlu0.b32.cont [2/16] %v34, 128
  %51 = vxpose.xlu0.b32.cont [3/16] %v35, 128
  %52 = vxpose.xlu0.b32.cont [4/16] %v36, 128
  %53 = vxpose.xlu0.b32.cont [5/16] %v37, 128
  %54 = vxpose.xlu0.b32.cont [6/16] %v38, 128
  %55 = vxpose.xlu0.b32.cont [7/16] %v39, 128
  %56 = vxpose.xlu0.b32.cont [8/16] %v40, 128
  %57 = vxpose.xlu0.b32.cont [9/16] %v41, 128
  %58 = vxpose.xlu0.b32.cont [10/16] %v42, 128
  %59 = vxpose.xlu0.b32.cont [11/16] %v43, 128
  %60 = vxpose.xlu0.b32.cont [12/16] %v44, 128
  %61 = vxpose.xlu0.b32.cont [13/16] %v45, 128
  %62 = vxpose.xlu0.b32.cont [14/16] %v46, 128
  %63 = vxpose.xlu0.b32.cont [15/16] %v47, 128
  %64 = vxpose.xlu0.b32.end [16/16] %v48, 128
  %v65 = vpop.trf.xlu0
  %v66 = vpop.trf.xlu0
  %v67 = vpop.trf.xlu0
  %v68 = vpop.trf.xlu0
  %v69 = vpop.trf.xlu0
  %v70 = vpop.trf.xlu0
  %v71 = vpop.trf.xlu0
  %v72 = vpop.trf.xlu0
  %v73 = vpop.trf.xlu0
  %v74 = vpop.trf.xlu0
  %v75 = vpop.trf.xlu0
  %v76 = vpop.trf.xlu0
  %v77 = vpop.trf.xlu0
  %v78 = vpop.trf.xlu0
  %v79 = vpop.trf.xlu0
  %v80 = vpop.trf.xlu0
  %v81 = vld [vmem:[%s1] sm:$0xff]
  %v82 = vld [vmem:[%s1 + $0x8] sm:$0xff]
  %v83 = vld [vmem:[%s1 + $0x10] sm:$0xff]
  %v84 = vld [vmem:[%s1 + $0x18] sm:$0xff]
  %v85 = vld [vmem:[%s1 + $0x20] sm:$0xff]
  %v86 = vld [vmem:[%s1 + $0x28] sm:$0xff]
  %v87 = vld [vmem:[%s1 + $0x30] sm:$0xff]
  %v88 = vld [vmem:[%s1 + $0x38] sm:$0xff]
  %v89 = vld [vmem:[%s1 + $0x40] sm:$0xff]
  %v90 = vld [vmem:[%s1 + $0x48] sm:$0xff]
  %v91 = vld [vmem:[%s1 + $0x50] sm:$0xff]
  %v92 = vld [vmem:[%s1 + $0x58] sm:$0xff]
  %v93 = vld [vmem:[%s1 + $0x60] sm:$0xff]
  %v94 = vld [vmem:[%s1 + $0x68] sm:$0xff]
  %v95 = vld [vmem:[%s1 + $0x70] sm:$0xff]
  %v96 = vld [vmem:[%s1 + $0x78] sm:$0xff]
  %97 = vxpose.xlu0.b32.start [1/16] %v81, 128
  %98 = vxpose.xlu0.b32.cont [2/16] %v82, 128
  %99 = vxpose.xlu0.b32.cont [3/16] %v83, 128
  %100 = vxpose.xlu0.b32.cont [4/16] %v84, 128
  %101 = vxpose.xlu0.b32.cont [5/16] %v85, 128
  %102 = vxpose.xlu0.b32.cont [6/16] %v86, 128
  %103 = vxpose.xlu0.b32.cont [7/16] %v87, 128
  %104 = vxpose.xlu0.b32.cont [8/16] %v88, 128
  %105 = vxpose.xlu0.b32.cont [9/16] %v89, 128
  %106 = vxpose.xlu0.b32.cont [10/16] %v90, 128
  %107 = vxpose.xlu0.b32.cont [11/16] %v91, 128
  %108 = vxpose.xlu0.b32.cont [12/16] %v92, 128
  %109 = vxpose.xlu0.b32.cont [13/16] %v93, 128
  %110 = vxpose.xlu0.b32.cont [14/16] %v94, 128
  %111 = vxpose.xlu0.b32.cont [15/16] %v95, 128
  %112 = vxpose.xlu0.b32.end [16/16] %v96, 128
  %v113 = vpop.trf.xlu0
  %v114 = vpop.trf.xlu0
  %v115 = vpop.trf.xlu0
  %v116 = vpop.trf.xlu0
  %v117 = vpop.trf.xlu0
  %v118 = vpop.trf.xlu0
  %v119 = vpop.trf.xlu0
  %v120 = vpop.trf.xlu0
  %v121 = vpop.trf.xlu0
  %v122 = vpop.trf.xlu0
  %v123 = vpop.trf.xlu0
  %v124 = vpop.trf.xlu0
  %v125 = vpop.trf.xlu0
  %v126 = vpop.trf.xlu0
  %v127 = vpop.trf.xlu0
  %v128 = vpop.trf.xlu0
  %v129 = vpack.c.bf16 %v114, %v113
  %v130 = vld [vmem:[%s2] sm:$0xf]
  %v131 = vld [vmem:[%s2 + $0x4] sm:$0xf]
  %v132 = vld [vmem:[%s2 + $0x8] sm:$0xf]
  %v133 = vld [vmem:[%s2 + $0xc] sm:$0xf]
  %v134 = vld [vmem:[%s2 + $0x10] sm:$0xf]
  %v135 = vld [vmem:[%s2 + $0x14] sm:$0xf]
  %v136 = vld [vmem:[%s2 + $0x18] sm:$0xf]
  %v137 = vld [vmem:[%s2 + $0x1c] sm:$0xf]
  %v138 = vld [vmem:[%s2 + $0x20] sm:$0xf]
  %v139 = vld [vmem:[%s2 + $0x24] sm:$0xf]
  %v140 = vld [vmem:[%s2 + $0x28] sm:$0xf]
  %v141 = vld [vmem:[%s2 + $0x2c] sm:$0xf]
  %v142 = vld [vmem:[%s2 + $0x30] sm:$0xf]
  %v143 = vld [vmem:[%s2 + $0x34] sm:$0xf]
  %v144 = vld [vmem:[%s2 + $0x38] sm:$0xf]
  %v145 = vld [vmem:[%s2 + $0x3c] sm:$0xf]
  %v146 = vld [vmem:[%s3] sm:$0xff]
  %v147 = vld [vmem:[%s3 + $0x8] sm:$0xff]
  %v148 = vld [vmem:[%s3 + $0x10] sm:$0xff]
  %v149 = vld [vmem:[%s3 + $0x18] sm:$0xff]
  %v150 = vld [vmem:[%s3 + $0x20] sm:$0xff]
  %v151 = vld [vmem:[%s3 + $0x28] sm:$0xff]
  %v152 = vld [vmem:[%s3 + $0x30] sm:$0xff]
  %v153 = vld [vmem:[%s3 + $0x38] sm:$0xff]
  %v154 = vld [vmem:[%s3 + $0x40] sm:$0xff]
  %v155 = vld [vmem:[%s3 + $0x48] sm:$0xff]
  %v156 = vld [vmem:[%s3 + $0x50] sm:$0xff]
  %v157 = vld [vmem:[%s3 + $0x58] sm:$0xff]
  %v158 = vld [vmem:[%s3 + $0x60] sm:$0xff]
  %v159 = vld [vmem:[%s3 + $0x68] sm:$0xff]
  %v160 = vld [vmem:[%s3 + $0x70] sm:$0xff]
  %v161 = vld [vmem:[%s3 + $0x78] sm:$0xff]
  %163 = vset.pattern.permute.xlu0 0
  %164 = vperm.xlu0 %163, %v146
  %v165 = vpop.permute.xlu0 %164
  %168 = vset.pattern.permute.xlu0 0
  %169 = vperm.xlu0 %168, %v147
  %v170 = vpop.permute.xlu0 %169
  %173 = vset.pattern.permute.xlu0 0
  %174 = vperm.xlu0 %173, %v148
  %v175 = vpop.permute.xlu0 %174
  %178 = vset.pattern.permute.xlu0 0
  %179 = vperm.xlu0 %178, %v149
  %v180 = vpop.permute.xlu0 %179
  %183 = vset.pattern.permute.xlu0 0
  %184 = vperm.xlu0 %183, %v150
  %v185 = vpop.permute.xlu0 %184
  %188 = vset.pattern.permute.xlu0 0
  %189 = vperm.xlu0 %188, %v151
  %v190 = vpop.permute.xlu0 %189
  %193 = vset.pattern.permute.xlu0 0
  %194 = vperm.xlu0 %193, %v152
  %v195 = vpop.permute.xlu0 %194
  %198 = vset.pattern.permute.xlu0 0
  %199 = vperm.xlu0 %198, %v153
  %v200 = vpop.permute.xlu0 %199
  %203 = vset.pattern.permute.xlu0 0
  %204 = vperm.xlu0 %203, %v154
  %v205 = vpop.permute.xlu0 %204
  %208 = vset.pattern.permute.xlu0 0
  %209 = vperm.xlu0 %208, %v155
  %v210 = vpop.permute.xlu0 %209
  %213 = vset.pattern.permute.xlu0 0
  %214 = vperm.xlu0 %213, %v156
  %v215 = vpop.permute.xlu0 %214
  %218 = vset.pattern.permute.xlu0 0
  %219 = vperm.xlu0 %218, %v157
  %v220 = vpop.permute.xlu0 %219
  %223 = vset.pattern.permute.xlu0 0
  %224 = vperm.xlu0 %223, %v158
  %v225 = vpop.permute.xlu0 %224
  %228 = vset.pattern.permute.xlu0 0
  %229 = vperm.xlu0 %228, %v159
  %v230 = vpop.permute.xlu0 %229
  %233 = vset.pattern.permute.xlu0 0
  %234 = vperm.xlu0 %233, %v160
  %v235 = vpop.permute.xlu0 %234
  %238 = vset.pattern.permute.xlu0 0
  %239 = vperm.xlu0 %238, %v161
  %v240 = vpop.permute.xlu0 %239
  %v258 = vunpack.c.l.b16 %v130
  %v259 = vunpack.c.l.b16 %v131
  %v260 = vunpack.c.l.b16 %v132
  %v261 = vunpack.c.l.b16 %v133
  %v262 = vunpack.c.l.b16 %v134
  %v263 = vunpack.c.l.b16 %v135
  %v264 = vunpack.c.l.b16 %v136
  %v265 = vunpack.c.l.b16 %v137
  %v266 = vunpack.c.l.b16 %v138
  %v267 = vunpack.c.l.b16 %v139
  %v268 = vunpack.c.l.b16 %v140
  %v269 = vunpack.c.l.b16 %v141
  %v270 = vunpack.c.l.b16 %v142
  %v271 = vunpack.c.l.b16 %v143
  %v272 = vunpack.c.l.b16 %v144
  %v273 = vunpack.c.l.b16 %v145
  %v274 = vpack.c.b16 %v259, %v258
  %v275 = vpack.c.b16 %v261, %v260
  %v276 = vpack.c.b16 %v263, %v262
  %v277 = vpack.c.b16 %v265, %v264
  %v278 = vpack.c.b16 %v267, %v266
  %v279 = vpack.c.b16 %v269, %v268
  %v280 = vpack.c.b16 %v271, %v270
  %v281 = vpack.c.b16 %v273, %v272
  %vm282 = vcmask 130048
  %v284 = vsel %vm282, %v274, 0
  %v287 = vsel %vm282, %v275, 0
  %v290 = vsel %vm282, %v276, 0
  %v293 = vsel %vm282, %v277, 0
  %v296 = vsel %vm282, %v278, 0
  %v299 = vsel %vm282, %v279, 0
  %v302 = vsel %vm282, %v280, 0
  %v305 = vsel %vm282, %v281, 0
  %307 = vmatprep.subr.bf16.mxu0 0
  %308 = vmatpush1.bf16.msra.mxu0 0
  %309 = vmatprep.subr.bf16.mxu0 0
  %310 = vmatpush1.bf16.msra.mxu0 0
  %311 = vmatprep.subr.bf16.mxu0 0
  %312 = vmatpush1.bf16.msra.mxu0 0
  %313 = vmatprep.subr.bf16.mxu0 0
  %314 = vmatpush1.bf16.msra.mxu0 0
  %315 = vmatprep.subr.bf16.mxu0 0
  %316 = vmatpush1.bf16.msra.mxu0 0
  %317 = vmatprep.subr.bf16.mxu0 0
  %318 = vmatpush1.bf16.msra.mxu0 0
  %319 = vmatprep.subr.bf16.mxu0 0
  %320 = vmatpush1.bf16.msra.mxu0 0
  %321 = vmatprep.subr.bf16.mxu0 0
  %322 = vmatpush1.bf16.msra.mxu0 %v129
  %323 = vmatprep.subr.bf16.mxu0 0
  %324 = vmatpush2.bf16.msra.mxu0 0
  %325 = vmatprep.subr.bf16.mxu0 0
  %326 = vmatpush2.bf16.msra.mxu0 0
  %327 = vmatprep.subr.bf16.mxu0 0
  %328 = vmatpush2.bf16.msra.mxu0 0
  %329 = vmatprep.subr.bf16.mxu0 0
  %330 = vmatpush2.bf16.msra.mxu0 0
  %331 = vmatprep.subr.bf16.mxu0 0
  %332 = vmatpush2.bf16.msra.mxu0 0
  %333 = vmatprep.subr.bf16.mxu0 0
  %334 = vmatpush2.bf16.msra.mxu0 0
  %335 = vmatprep.subr.bf16.mxu0 0
  %336 = vmatpush2.bf16.msra.mxu0 0
  %337 = vmatprep.subr.bf16.mxu0 0
  %338 = vmatpush2.bf16.msra.mxu0 0
  %339 = vmatprep.mubr.bf16.mxu0 0
  %340 = vmatmul.mubr.bf16.gmra.mxu0 %v284
  %v341 = vpop.f32.mrf.mxu0
  %v342 = vadd.f32 %v165, %v341
  %v343 = vpop.f32.mrf.mxu0
  %v344 = vpop.f32.mrf.mxu0
  %v345 = vadd.f32 %v170, %v344
  %v346 = vpop.f32.mrf.mxu0
  %347 = vmatprep.mubr.bf16.mxu0 0
  %348 = vmatmul.mubr.bf16.gmra.mxu0 %v287
  %v349 = vpop.f32.mrf.mxu0
  %v350 = vadd.f32 %v175, %v349
  %v351 = vpop.f32.mrf.mxu0
  %v352 = vpop.f32.mrf.mxu0
  %v353 = vadd.f32 %v180, %v352
  %v354 = vpop.f32.mrf.mxu0
  %355 = vmatprep.mubr.bf16.mxu0 0
  %356 = vmatmul.mubr.bf16.gmra.mxu0 %v290
  %v357 = vpop.f32.mrf.mxu0
  %v358 = vadd.f32 %v185, %v357
  %v359 = vpop.f32.mrf.mxu0
  %v360 = vpop.f32.mrf.mxu0
  %v361 = vadd.f32 %v190, %v360
  %v362 = vpop.f32.mrf.mxu0
  %363 = vmatprep.mubr.bf16.mxu0 0
  %364 = vmatmul.mubr.bf16.gmra.mxu0 %v293
  %v365 = vpop.f32.mrf.mxu0
  %v366 = vadd.f32 %v195, %v365
  %v367 = vpop.f32.mrf.mxu0
  %v368 = vpop.f32.mrf.mxu0
  %v369 = vadd.f32 %v200, %v368
  %v370 = vpop.f32.mrf.mxu0
  %371 = vmatprep.mubr.bf16.mxu0 0
  %372 = vmatmul.mubr.bf16.gmra.mxu0 %v296
  %v373 = vpop.f32.mrf.mxu0
  %v374 = vadd.f32 %v205, %v373
  %v375 = vpop.f32.mrf.mxu0
  %v376 = vpop.f32.mrf.mxu0
  %v377 = vadd.f32 %v210, %v376
  %v378 = vpop.f32.mrf.mxu0
  %379 = vmatprep.mubr.bf16.mxu0 0
  %380 = vmatmul.mubr.bf16.gmra.mxu0 %v299
  %v381 = vpop.f32.mrf.mxu0
  %v382 = vadd.f32 %v215, %v381
  %v383 = vpop.f32.mrf.mxu0
  %v384 = vpop.f32.mrf.mxu0
  %v385 = vadd.f32 %v220, %v384
  %v386 = vpop.f32.mrf.mxu0
  %387 = vmatprep.mubr.bf16.mxu0 0
  %388 = vmatmul.mubr.bf16.gmra.mxu0 %v302
  %v389 = vpop.f32.mrf.mxu0
  %v390 = vadd.f32 %v225, %v389
  %v391 = vpop.f32.mrf.mxu0
  %v392 = vpop.f32.mrf.mxu0
  %v393 = vadd.f32 %v230, %v392
  %v394 = vpop.f32.mrf.mxu0
  %395 = vmatprep.mubr.bf16.mxu0 0
  %396 = vmatmul.mubr.bf16.gmra.mxu0 %v305
  %v397 = vpop.f32.mrf.mxu0
  %v398 = vadd.f32 %v235, %v397
  %v399 = vpop.f32.mrf.mxu0
  %v400 = vpop.f32.mrf.mxu0
  %v401 = vadd.f32 %v240, %v400
  %v402 = vpop.f32.mrf.mxu0
  %403 = vdwg.mxu0
  %v404 = vld [vmem:[%s4] sm:$0xf]
  %v405 = vld [vmem:[%s4 + $0x4] sm:$0xf]
  %v406 = vld [vmem:[%s4 + $0x8] sm:$0xf]
  %v407 = vld [vmem:[%s4 + $0xc] sm:$0xf]
  %v408 = vpack.c.bf16 %v68, %v67
  %v413 = vunpack.c.l.b16 %v404
  %v414 = vunpack.c.l.b16 %v405
  %v415 = vunpack.c.l.b16 %v406
  %v416 = vunpack.c.l.b16 %v407
  %v417 = vpack.c.b16 %v414, %v413
  %v418 = vpack.c.b16 %v416, %v415
  %v420 = vsel %vm282, %v417, 0
  %v423 = vsel %vm282, %v418, 0
  %425 = vmatprep.subr.bf16.mxu0 0
  %426 = vmatpush1.bf16.msra.mxu0 0
  %427 = vmatprep.subr.bf16.mxu0 0
  %428 = vmatpush1.bf16.msra.mxu0 0
  %429 = vmatprep.subr.bf16.mxu0 0
  %430 = vmatpush1.bf16.msra.mxu0 0
  %431 = vmatprep.subr.bf16.mxu0 0
  %432 = vmatpush1.bf16.msra.mxu0 0
  %433 = vmatprep.subr.bf16.mxu0 0
  %434 = vmatpush1.bf16.msra.mxu0 0
  %435 = vmatprep.subr.bf16.mxu0 0
  %436 = vmatpush1.bf16.msra.mxu0 0
  %437 = vmatprep.subr.bf16.mxu0 0
  %438 = vmatpush1.bf16.msra.mxu0 0
  %439 = vmatprep.subr.bf16.mxu0 0
  %440 = vmatpush1.bf16.msra.mxu0 %v408
  %441 = vmatprep.subr.bf16.mxu0 0
  %442 = vmatpush2.bf16.msra.mxu0 0
  %443 = vmatprep.subr.bf16.mxu0 0
  %444 = vmatpush2.bf16.msra.mxu0 0
  %445 = vmatprep.subr.bf16.mxu0 0
  %446 = vmatpush2.bf16.msra.mxu0 0
  %447 = vmatprep.subr.bf16.mxu0 0
  %448 = vmatpush2.bf16.msra.mxu0 0
  %449 = vmatprep.subr.bf16.mxu0 0
  %450 = vmatpush2.bf16.msra.mxu0 0
  %451 = vmatprep.subr.bf16.mxu0 0
  %452 = vmatpush2.bf16.msra.mxu0 0
  %453 = vmatprep.subr.bf16.mxu0 0
  %454 = vmatpush2.bf16.msra.mxu0 0
  %455 = vmatprep.subr.bf16.mxu0 0
  %456 = vmatpush2.bf16.msra.mxu0 0
  %457 = vmatprep.mubr.bf16.mxu0 0
  %458 = vmatmul.mubr.bf16.gmra.mxu0 %v420
  %v459 = vpop.f32.mrf.mxu0
  %v460 = vadd.f32 %v342, %v459
  %v461 = vpop.f32.mrf.mxu0
  %v462 = vpop.f32.mrf.mxu0
  %v463 = vadd.f32 %v345, %v462
  %v464 = vpop.f32.mrf.mxu0
  %465 = vmatprep.mubr.bf16.mxu0 0
  %466 = vmatmul.mubr.bf16.gmra.mxu0 %v423
  %v467 = vpop.f32.mrf.mxu0
  %v468 = vadd.f32 %v350, %v467
  %v469 = vpop.f32.mrf.mxu0
  %v470 = vpop.f32.mrf.mxu0
  %v471 = vadd.f32 %v353, %v470
  %v472 = vpop.f32.mrf.mxu0
  %473 = vdwg.mxu0
  %v474 = vmax.f32 %v460, 0.0
  %v475 = vmax.f32 %v463, 0.0
  %v476 = vmax.f32 %v468, 0.0
  %v477 = vmax.f32 %v471, 0.0
  %v478 = vpack.c.bf16 %v475, %v474
  %v479 = vpack.c.bf16 %v477, %v476
  %v480 = vld [vmem:[%s5] sm:$0xf]
  %v481 = vld [vmem:[%s5 + $0x4] sm:$0xf]
  %v482 = vld [vmem:[%s5 + $0x8] sm:$0xf]
  %v483 = vld [vmem:[%s5 + $0xc] sm:$0xf]
  %v484 = vld [vmem:[%s6] sm:$0xff]
  %v485 = vld [vmem:[%s6 + $0x8] sm:$0xff]
  %v486 = vld [vmem:[%s6 + $0x10] sm:$0xff]
  %v487 = vld [vmem:[%s6 + $0x18] sm:$0xff]
  %489 = vset.pattern.permute.xlu0 0
  %490 = vperm.xlu0 %489, %v484
  %v491 = vpop.permute.xlu0 %490
  %494 = vset.pattern.permute.xlu0 0
  %495 = vperm.xlu0 %494, %v485
  %v496 = vpop.permute.xlu0 %495
  %499 = vset.pattern.permute.xlu0 0
  %500 = vperm.xlu0 %499, %v486
  %v501 = vpop.permute.xlu0 %500
  %504 = vset.pattern.permute.xlu0 0
  %505 = vperm.xlu0 %504, %v487
  %v506 = vpop.permute.xlu0 %505
  %v512 = vunpack.c.l.b16 %v480
  %v513 = vunpack.c.l.b16 %v481
  %v514 = vunpack.c.l.b16 %v482
  %v515 = vunpack.c.l.b16 %v483
  %v516 = vpack.c.b16 %v513, %v512
  %v517 = vpack.c.b16 %v515, %v514
  %vm518 = vcmask 261120
  %v520 = vsel %vm518, %v516, 0
  %v523 = vsel %vm518, %v517, 0
  %525 = vmatprep.subr.bf16.mxu0 0
  %526 = vmatpush1.bf16.msra.mxu0 0
  %527 = vmatprep.subr.bf16.mxu0 0
  %528 = vmatpush1.bf16.msra.mxu0 0
  %529 = vmatprep.subr.bf16.mxu0 0
  %530 = vmatpush1.bf16.msra.mxu0 0
  %531 = vmatprep.subr.bf16.mxu0 0
  %532 = vmatpush1.bf16.msra.mxu0 0
  %533 = vmatprep.subr.bf16.mxu0 0
  %534 = vmatpush1.bf16.msra.mxu0 0
  %535 = vmatprep.subr.bf16.mxu0 0
  %536 = vmatpush1.bf16.msra.mxu0 0
  %537 = vmatprep.subr.bf16.mxu0 0
  %538 = vmatpush1.bf16.msra.mxu0 %v479
  %539 = vmatprep.subr.bf16.mxu0 0
  %540 = vmatpush1.bf16.msra.mxu0 %v478
  %541 = vmatprep.subr.bf16.mxu0 0
  %542 = vmatpush2.bf16.msra.mxu0 0
  %543 = vmatprep.subr.bf16.mxu0 0
  %544 = vmatpush2.bf16.msra.mxu0 0
  %545 = vmatprep.subr.bf16.mxu0 0
  %546 = vmatpush2.bf16.msra.mxu0 0
  %547 = vmatprep.subr.bf16.mxu0 0
  %548 = vmatpush2.bf16.msra.mxu0 0
  %549 = vmatprep.subr.bf16.mxu0 0
  %550 = vmatpush2.bf16.msra.mxu0 0
  %551 = vmatprep.subr.bf16.mxu0 0
  %552 = vmatpush2.bf16.msra.mxu0 0
  %553 = vmatprep.subr.bf16.mxu0 0
  %554 = vmatpush2.bf16.msra.mxu0 0
  %555 = vmatprep.subr.bf16.mxu0 0
  %556 = vmatpush2.bf16.msra.mxu0 0
  %557 = vmatprep.mubr.bf16.mxu0 0
  %558 = vmatmul.mubr.bf16.gmra.mxu0 %v520
  %v559 = vpop.f32.mrf.mxu0
  %v560 = vadd.f32 %v491, %v559
  %v561 = vpop.f32.mrf.mxu0
  %v562 = vpop.f32.mrf.mxu0
  %v563 = vadd.f32 %v496, %v562
  %v564 = vpop.f32.mrf.mxu0
  %565 = vmatprep.mubr.bf16.mxu0 0
  %566 = vmatmul.mubr.bf16.gmra.mxu0 %v523
  %v567 = vpop.f32.mrf.mxu0
  %v568 = vadd.f32 %v501, %v567
  %v569 = vpop.f32.mrf.mxu0
  %v570 = vpop.f32.mrf.mxu0
  %v571 = vadd.f32 %v506, %v570
  %v572 = vpop.f32.mrf.mxu0
  %573 = vdwg.mxu0
  %v574 = vmax.f32 %v560, 0.0
  %v575 = vmax.f32 %v563, 0.0
  %v576 = vmax.f32 %v568, 0.0
  %v577 = vmax.f32 %v571, 0.0
  %v578 = vpack.c.bf16 %v575, %v574
  %v579 = vpack.c.bf16 %v577, %v576
  %v580 = vld [vmem:[%s7] sm:$0xf]
  %v581 = vld [vmem:[%s7 + $0x4] sm:$0xf]
  %v582 = vld [vmem:[%s7 + $0x8] sm:$0xf]
  %v583 = vld [vmem:[%s7 + $0xc] sm:$0xf]
  %v584 = vld [vmem:[%s8] sm:$0xff]
  %v585 = vld [vmem:[%s8 + $0x8] sm:$0xff]
  %v586 = vld [vmem:[%s8 + $0x10] sm:$0xff]
  %v587 = vld [vmem:[%s8 + $0x18] sm:$0xff]
  %589 = vset.pattern.permute.xlu0 0
  %590 = vperm.xlu0 %589, %v584
  %v591 = vpop.permute.xlu0 %590
  %594 = vset.pattern.permute.xlu0 0
  %595 = vperm.xlu0 %594, %v585
  %v596 = vpop.permute.xlu0 %595
  %599 = vset.pattern.permute.xlu0 0
  %600 = vperm.xlu0 %599, %v586
  %v601 = vpop.permute.xlu0 %600
  %604 = vset.pattern.permute.xlu0 0
  %605 = vperm.xlu0 %604, %v587
  %v606 = vpop.permute.xlu0 %605
  %v612 = vunpack.c.l.b16 %v580
  %v613 = vunpack.c.l.b16 %v581
  %v614 = vunpack.c.l.b16 %v582
  %v615 = vunpack.c.l.b16 %v583
  %v616 = vpack.c.b16 %v613, %v612
  %v617 = vpack.c.b16 %v615, %v614
  %v619 = vsel %vm518, %v616, 0
  %v622 = vsel %vm518, %v617, 0
  %624 = vmatprep.subr.bf16.mxu0 0
  %625 = vmatpush1.bf16.msra.mxu0 0
  %626 = vmatprep.subr.bf16.mxu0 0
  %627 = vmatpush1.bf16.msra.mxu0 0
  %628 = vmatprep.subr.bf16.mxu0 0
  %629 = vmatpush1.bf16.msra.mxu0 0
  %630 = vmatprep.subr.bf16.mxu0 0
  %631 = vmatpush1.bf16.msra.mxu0 0
  %632 = vmatprep.subr.bf16.mxu0 0
  %633 = vmatpush1.bf16.msra.mxu0 0
  %634 = vmatprep.subr.bf16.mxu0 0
  %635 = vmatpush1.bf16.msra.mxu0 0
  %636 = vmatprep.subr.bf16.mxu0 0
  %637 = vmatpush1.bf16.msra.mxu0 %v579
  %638 = vmatprep.subr.bf16.mxu0 0
  %639 = vmatpush1.bf16.msra.mxu0 %v578
  %640 = vmatprep.subr.bf16.mxu0 0
  %641 = vmatpush2.bf16.msra.mxu0 0
  %642 = vmatprep.subr.bf16.mxu0 0
  %643 = vmatpush2.bf16.msra.mxu0 0
  %644 = vmatprep.subr.bf16.mxu0 0
  %645 = vmatpush2.bf16.msra.mxu0 0
  %646 = vmatprep.subr.bf16.mxu0 0
  %647 = vmatpush2.bf16.msra.mxu0 0
  %648 = vmatprep.subr.bf16.mxu0 0
  %649 = vmatpush2.bf16.msra.mxu0 0
  %650 = vmatprep.subr.bf16.mxu0 0
  %651 = vmatpush2.bf16.msra.mxu0 0
  %652 = vmatprep.subr.bf16.mxu0 0
  %653 = vmatpush2.bf16.msra.mxu0 0
  %654 = vmatprep.subr.bf16.mxu0 0
  %655 = vmatpush2.bf16.msra.mxu0 0
  %656 = vmatprep.mubr.bf16.mxu0 0
  %657 = vmatmul.mubr.bf16.gmra.mxu0 %v619
  %v658 = vpop.f32.mrf.mxu0
  %v659 = vadd.f32 %v591, %v658
  %v660 = vpop.f32.mrf.mxu0
  %v661 = vpop.f32.mrf.mxu0
  %v662 = vadd.f32 %v596, %v661
  %v663 = vpop.f32.mrf.mxu0
  %664 = vmatprep.mubr.bf16.mxu0 0
  %665 = vmatmul.mubr.bf16.gmra.mxu0 %v622
  %v666 = vpop.f32.mrf.mxu0
  %v667 = vadd.f32 %v601, %v666
  %v668 = vpop.f32.mrf.mxu0
  %v669 = vpop.f32.mrf.mxu0
  %v670 = vadd.f32 %v606, %v669
  %v671 = vpop.f32.mrf.mxu0
  %672 = vdwg.mxu0
  %v673 = vtanh.pop %v659
  %v674 = vtanh.pop %v662
  %v675 = vmul.f32 %v673, 0.1
  %v676 = vmul.f32 %v674, 0.1
  %v677 = vmul.f32 %v675, 1.442695
  %v678 = vpow.pop %v677
  %v679 = vmul.f32 %v676, 1.442695
  %v680 = vpow.pop %v679
  %v681 = vmul.f32 %v65, %v678
  %v682 = vmul.f32 %v66, %v680
  %v683 = vadd.f32 %v681, %v667
  %v684 = vadd.f32 %v682, %v670
  %s685 = scalar_lea.vmem %s4, 16
  %v686 = vld [vmem:[%s685] sm:$0xf]
  %v687 = vld [vmem:[%s685 + $0x4] sm:$0xf]
  %v688 = vld [vmem:[%s685 + $0x8] sm:$0xf]
  %v689 = vld [vmem:[%s685 + $0xc] sm:$0xf]
  %v690 = vpack.c.bf16 %v684, %v683
  %v695 = vunpack.c.l.b16 %v686
  %v696 = vunpack.c.l.b16 %v687
  %v697 = vunpack.c.l.b16 %v688
  %v698 = vunpack.c.l.b16 %v689
  %v699 = vpack.c.b16 %v696, %v695
  %v700 = vpack.c.b16 %v698, %v697
  %v702 = vsel %vm282, %v699, 0
  %v705 = vsel %vm282, %v700, 0
  %707 = vmatprep.subr.bf16.mxu0 0
  %708 = vmatpush1.bf16.msra.mxu0 0
  %709 = vmatprep.subr.bf16.mxu0 0
  %710 = vmatpush1.bf16.msra.mxu0 0
  %711 = vmatprep.subr.bf16.mxu0 0
  %712 = vmatpush1.bf16.msra.mxu0 0
  %713 = vmatprep.subr.bf16.mxu0 0
  %714 = vmatpush1.bf16.msra.mxu0 0
  %715 = vmatprep.subr.bf16.mxu0 0
  %716 = vmatpush1.bf16.msra.mxu0 0
  %717 = vmatprep.subr.bf16.mxu0 0
  %718 = vmatpush1.bf16.msra.mxu0 0
  %719 = vmatprep.subr.bf16.mxu0 0
  %720 = vmatpush1.bf16.msra.mxu0 0
  %721 = vmatprep.subr.bf16.mxu0 0
  %722 = vmatpush1.bf16.msra.mxu0 %v690
  %723 = vmatprep.subr.bf16.mxu0 0
  %724 = vmatpush2.bf16.msra.mxu0 0
  %725 = vmatprep.subr.bf16.mxu0 0
  %726 = vmatpush2.bf16.msra.mxu0 0
  %727 = vmatprep.subr.bf16.mxu0 0
  %728 = vmatpush2.bf16.msra.mxu0 0
  %729 = vmatprep.subr.bf16.mxu0 0
  %730 = vmatpush2.bf16.msra.mxu0 0
  %731 = vmatprep.subr.bf16.mxu0 0
  %732 = vmatpush2.bf16.msra.mxu0 0
  %733 = vmatprep.subr.bf16.mxu0 0
  %734 = vmatpush2.bf16.msra.mxu0 0
  %735 = vmatprep.subr.bf16.mxu0 0
  %736 = vmatpush2.bf16.msra.mxu0 0
  %737 = vmatprep.subr.bf16.mxu0 0
  %738 = vmatpush2.bf16.msra.mxu0 0
  %739 = vmatprep.mubr.bf16.mxu0 0
  %740 = vmatmul.mubr.bf16.gmra.mxu0 %v702
  %v741 = vpop.f32.mrf.mxu0
  %v742 = vadd.f32 %v358, %v741
  %v743 = vpop.f32.mrf.mxu0
  %v744 = vpop.f32.mrf.mxu0
  %v745 = vadd.f32 %v361, %v744
  %v746 = vpop.f32.mrf.mxu0
  %747 = vmatprep.mubr.bf16.mxu0 0
  %748 = vmatmul.mubr.bf16.gmra.mxu0 %v705
  %v749 = vpop.f32.mrf.mxu0
  %v750 = vadd.f32 %v366, %v749
  %v751 = vpop.f32.mrf.mxu0
  %v752 = vpop.f32.mrf.mxu0
  %v753 = vadd.f32 %v369, %v752
  %v754 = vpop.f32.mrf.mxu0
  %755 = vdwg.mxu0
  %v756 = vmax.f32 %v742, 0.0
  %v757 = vmax.f32 %v745, 0.0
  %v758 = vmax.f32 %v750, 0.0
  %v759 = vmax.f32 %v753, 0.0
  %v760 = vpack.c.bf16 %v757, %v756
  %v761 = vpack.c.bf16 %v759, %v758
  %s762 = scalar_lea.vmem %s5, 16
  %v763 = vld [vmem:[%s762] sm:$0xf]
  %v764 = vld [vmem:[%s762 + $0x4] sm:$0xf]
  %v765 = vld [vmem:[%s762 + $0x8] sm:$0xf]
  %v766 = vld [vmem:[%s762 + $0xc] sm:$0xf]
  %s767 = scalar_lea.vmem %s6, 32
  %v768 = vld [vmem:[%s767] sm:$0xff]
  %v769 = vld [vmem:[%s767 + $0x8] sm:$0xff]
  %v770 = vld [vmem:[%s767 + $0x10] sm:$0xff]
  %v771 = vld [vmem:[%s767 + $0x18] sm:$0xff]
  %773 = vset.pattern.permute.xlu0 0
  %774 = vperm.xlu0 %773, %v768
  %v775 = vpop.permute.xlu0 %774
  %778 = vset.pattern.permute.xlu0 0
  %779 = vperm.xlu0 %778, %v769
  %v780 = vpop.permute.xlu0 %779
  %783 = vset.pattern.permute.xlu0 0
  %784 = vperm.xlu0 %783, %v770
  %v785 = vpop.permute.xlu0 %784
  %788 = vset.pattern.permute.xlu0 0
  %789 = vperm.xlu0 %788, %v771
  %v790 = vpop.permute.xlu0 %789
  %v796 = vunpack.c.l.b16 %v763
  %v797 = vunpack.c.l.b16 %v764
  %v798 = vunpack.c.l.b16 %v765
  %v799 = vunpack.c.l.b16 %v766
  %v800 = vpack.c.b16 %v797, %v796
  %v801 = vpack.c.b16 %v799, %v798
  %v803 = vsel %vm518, %v800, 0
  %v806 = vsel %vm518, %v801, 0
  %808 = vmatprep.subr.bf16.mxu0 0
  %809 = vmatpush1.bf16.msra.mxu0 0
  %810 = vmatprep.subr.bf16.mxu0 0
  %811 = vmatpush1.bf16.msra.mxu0 0
  %812 = vmatprep.subr.bf16.mxu0 0
  %813 = vmatpush1.bf16.msra.mxu0 0
  %814 = vmatprep.subr.bf16.mxu0 0
  %815 = vmatpush1.bf16.msra.mxu0 0
  %816 = vmatprep.subr.bf16.mxu0 0
  %817 = vmatpush1.bf16.msra.mxu0 0
  %818 = vmatprep.subr.bf16.mxu0 0
  %819 = vmatpush1.bf16.msra.mxu0 0
  %820 = vmatprep.subr.bf16.mxu0 0
  %821 = vmatpush1.bf16.msra.mxu0 %v761
  %822 = vmatprep.subr.bf16.mxu0 0
  %823 = vmatpush1.bf16.msra.mxu0 %v760
  %824 = vmatprep.subr.bf16.mxu0 0
  %825 = vmatpush2.bf16.msra.mxu0 0
  %826 = vmatprep.subr.bf16.mxu0 0
  %827 = vmatpush2.bf16.msra.mxu0 0
  %828 = vmatprep.subr.bf16.mxu0 0
  %829 = vmatpush2.bf16.msra.mxu0 0
  %830 = vmatprep.subr.bf16.mxu0 0
  %831 = vmatpush2.bf16.msra.mxu0 0
  %832 = vmatprep.subr.bf16.mxu0 0
  %833 = vmatpush2.bf16.msra.mxu0 0
  %834 = vmatprep.subr.bf16.mxu0 0
  %835 = vmatpush2.bf16.msra.mxu0 0
  %836 = vmatprep.subr.bf16.mxu0 0
  %837 = vmatpush2.bf16.msra.mxu0 0
  %838 = vmatprep.subr.bf16.mxu0 0
  %839 = vmatpush2.bf16.msra.mxu0 0
  %840 = vmatprep.mubr.bf16.mxu0 0
  %841 = vmatmul.mubr.bf16.gmra.mxu0 %v803
  %v842 = vpop.f32.mrf.mxu0
  %v843 = vadd.f32 %v775, %v842
  %v844 = vpop.f32.mrf.mxu0
  %v845 = vpop.f32.mrf.mxu0
  %v846 = vadd.f32 %v780, %v845
  %v847 = vpop.f32.mrf.mxu0
  %848 = vmatprep.mubr.bf16.mxu0 0
  %849 = vmatmul.mubr.bf16.gmra.mxu0 %v806
  %v850 = vpop.f32.mrf.mxu0
  %v851 = vadd.f32 %v785, %v850
  %v852 = vpop.f32.mrf.mxu0
  %v853 = vpop.f32.mrf.mxu0
  %v854 = vadd.f32 %v790, %v853
  %v855 = vpop.f32.mrf.mxu0
  %856 = vdwg.mxu0
  %v857 = vmax.f32 %v843, 0.0
  %v858 = vmax.f32 %v846, 0.0
  %v859 = vmax.f32 %v851, 0.0
  %v860 = vmax.f32 %v854, 0.0
  %v861 = vpack.c.bf16 %v858, %v857
  %v862 = vpack.c.bf16 %v860, %v859
  %s863 = scalar_lea.vmem %s7, 16
  %v864 = vld [vmem:[%s863] sm:$0xf]
  %v865 = vld [vmem:[%s863 + $0x4] sm:$0xf]
  %v866 = vld [vmem:[%s863 + $0x8] sm:$0xf]
  %v867 = vld [vmem:[%s863 + $0xc] sm:$0xf]
  %s868 = scalar_lea.vmem %s8, 32
  %v869 = vld [vmem:[%s868] sm:$0xff]
  %v870 = vld [vmem:[%s868 + $0x8] sm:$0xff]
  %v871 = vld [vmem:[%s868 + $0x10] sm:$0xff]
  %v872 = vld [vmem:[%s868 + $0x18] sm:$0xff]
  %874 = vset.pattern.permute.xlu0 0
  %875 = vperm.xlu0 %874, %v869
  %v876 = vpop.permute.xlu0 %875
  %879 = vset.pattern.permute.xlu0 0
  %880 = vperm.xlu0 %879, %v870
  %v881 = vpop.permute.xlu0 %880
  %884 = vset.pattern.permute.xlu0 0
  %885 = vperm.xlu0 %884, %v871
  %v886 = vpop.permute.xlu0 %885
  %889 = vset.pattern.permute.xlu0 0
  %890 = vperm.xlu0 %889, %v872
  %v891 = vpop.permute.xlu0 %890
  %v897 = vunpack.c.l.b16 %v864
  %v898 = vunpack.c.l.b16 %v865
  %v899 = vunpack.c.l.b16 %v866
  %v900 = vunpack.c.l.b16 %v867
  %v901 = vpack.c.b16 %v898, %v897
  %v902 = vpack.c.b16 %v900, %v899
  %v904 = vsel %vm518, %v901, 0
  %v907 = vsel %vm518, %v902, 0
  %909 = vmatprep.subr.bf16.mxu0 0
  %910 = vmatpush1.bf16.msra.mxu0 0
  %911 = vmatprep.subr.bf16.mxu0 0
  %912 = vmatpush1.bf16.msra.mxu0 0
  %913 = vmatprep.subr.bf16.mxu0 0
  %914 = vmatpush1.bf16.msra.mxu0 0
  %915 = vmatprep.subr.bf16.mxu0 0
  %916 = vmatpush1.bf16.msra.mxu0 0
  %917 = vmatprep.subr.bf16.mxu0 0
  %918 = vmatpush1.bf16.msra.mxu0 0
  %919 = vmatprep.subr.bf16.mxu0 0
  %920 = vmatpush1.bf16.msra.mxu0 0
  %921 = vmatprep.subr.bf16.mxu0 0
  %922 = vmatpush1.bf16.msra.mxu0 %v862
  %923 = vmatprep.subr.bf16.mxu0 0
  %924 = vmatpush1.bf16.msra.mxu0 %v861
  %925 = vmatprep.subr.bf16.mxu0 0
  %926 = vmatpush2.bf16.msra.mxu0 0
  %927 = vmatprep.subr.bf16.mxu0 0
  %928 = vmatpush2.bf16.msra.mxu0 0
  %929 = vmatprep.subr.bf16.mxu0 0
  %930 = vmatpush2.bf16.msra.mxu0 0
  %931 = vmatprep.subr.bf16.mxu0 0
  %932 = vmatpush2.bf16.msra.mxu0 0
  %933 = vmatprep.subr.bf16.mxu0 0
  %934 = vmatpush2.bf16.msra.mxu0 0
  %935 = vmatprep.subr.bf16.mxu0 0
  %936 = vmatpush2.bf16.msra.mxu0 0
  %937 = vmatprep.subr.bf16.mxu0 0
  %938 = vmatpush2.bf16.msra.mxu0 0
  %939 = vmatprep.subr.bf16.mxu0 0
  %940 = vmatpush2.bf16.msra.mxu0 0
  %941 = vmatprep.mubr.bf16.mxu0 0
  %942 = vmatmul.mubr.bf16.gmra.mxu0 %v904
  %v943 = vpop.f32.mrf.mxu0
  %v944 = vadd.f32 %v876, %v943
  %v945 = vpop.f32.mrf.mxu0
  %v946 = vpop.f32.mrf.mxu0
  %v947 = vadd.f32 %v881, %v946
  %v948 = vpop.f32.mrf.mxu0
  %949 = vmatprep.mubr.bf16.mxu0 0
  %950 = vmatmul.mubr.bf16.gmra.mxu0 %v907
  %v951 = vpop.f32.mrf.mxu0
  %v952 = vadd.f32 %v886, %v951
  %v953 = vpop.f32.mrf.mxu0
  %v954 = vpop.f32.mrf.mxu0
  %v955 = vadd.f32 %v891, %v954
  %v956 = vpop.f32.mrf.mxu0
  %957 = vdwg.mxu0
  %v958 = vtanh.pop %v944
  %v959 = vtanh.pop %v947
  %v960 = vmul.f32 %v958, 0.1
  %v961 = vmul.f32 %v959, 0.1
  %v962 = vmul.f32 %v960, 1.442695
  %v963 = vpow.pop %v962
  %v964 = vmul.f32 %v961, 1.442695
  %v965 = vpow.pop %v964
  %v966 = vmul.f32 %v67, %v963
  %v967 = vmul.f32 %v68, %v965
  %v968 = vadd.f32 %v966, %v952
  %v969 = vadd.f32 %v967, %v955
  %s970 = scalar_lea.vmem %s4, 32
  %v971 = vld [vmem:[%s970] sm:$0xf]
  %v972 = vld [vmem:[%s970 + $0x4] sm:$0xf]
  %v973 = vld [vmem:[%s970 + $0x8] sm:$0xf]
  %v974 = vld [vmem:[%s970 + $0xc] sm:$0xf]
  %v975 = vpack.c.bf16 %v969, %v968
  %v980 = vunpack.c.l.b16 %v971
  %v981 = vunpack.c.l.b16 %v972
  %v982 = vunpack.c.l.b16 %v973
  %v983 = vunpack.c.l.b16 %v974
  %v984 = vpack.c.b16 %v981, %v980
  %v985 = vpack.c.b16 %v983, %v982
  %v987 = vsel %vm282, %v984, 0
  %v990 = vsel %vm282, %v985, 0
  %992 = vmatprep.subr.bf16.mxu0 0
  %993 = vmatpush1.bf16.msra.mxu0 0
  %994 = vmatprep.subr.bf16.mxu0 0
  %995 = vmatpush1.bf16.msra.mxu0 0
  %996 = vmatprep.subr.bf16.mxu0 0
  %997 = vmatpush1.bf16.msra.mxu0 0
  %998 = vmatprep.subr.bf16.mxu0 0
  %999 = vmatpush1.bf16.msra.mxu0 0
  %1000 = vmatprep.subr.bf16.mxu0 0
  %1001 = vmatpush1.bf16.msra.mxu0 0
  %1002 = vmatprep.subr.bf16.mxu0 0
  %1003 = vmatpush1.bf16.msra.mxu0 0
  %1004 = vmatprep.subr.bf16.mxu0 0
  %1005 = vmatpush1.bf16.msra.mxu0 0
  %1006 = vmatprep.subr.bf16.mxu0 0
  %1007 = vmatpush1.bf16.msra.mxu0 %v975
  %1008 = vmatprep.subr.bf16.mxu0 0
  %1009 = vmatpush2.bf16.msra.mxu0 0
  %1010 = vmatprep.subr.bf16.mxu0 0
  %1011 = vmatpush2.bf16.msra.mxu0 0
  %1012 = vmatprep.subr.bf16.mxu0 0
  %1013 = vmatpush2.bf16.msra.mxu0 0
  %1014 = vmatprep.subr.bf16.mxu0 0
  %1015 = vmatpush2.bf16.msra.mxu0 0
  %1016 = vmatprep.subr.bf16.mxu0 0
  %1017 = vmatpush2.bf16.msra.mxu0 0
  %1018 = vmatprep.subr.bf16.mxu0 0
  %1019 = vmatpush2.bf16.msra.mxu0 0
  %1020 = vmatprep.subr.bf16.mxu0 0
  %1021 = vmatpush2.bf16.msra.mxu0 0
  %1022 = vmatprep.subr.bf16.mxu0 0
  %1023 = vmatpush2.bf16.msra.mxu0 0
  %1024 = vmatprep.mubr.bf16.mxu0 0
  %1025 = vmatmul.mubr.bf16.gmra.mxu0 %v987
  %v1026 = vpop.f32.mrf.mxu0
  %v1027 = vadd.f32 %v374, %v1026
  %v1028 = vpop.f32.mrf.mxu0
  %v1029 = vpop.f32.mrf.mxu0
  %v1030 = vadd.f32 %v377, %v1029
  %v1031 = vpop.f32.mrf.mxu0
  %1032 = vmatprep.mubr.bf16.mxu0 0
  %1033 = vmatmul.mubr.bf16.gmra.mxu0 %v990
  %v1034 = vpop.f32.mrf.mxu0
  %v1035 = vadd.f32 %v382, %v1034
  %v1036 = vpop.f32.mrf.mxu0
  %v1037 = vpop.f32.mrf.mxu0
  %v1038 = vadd.f32 %v385, %v1037
  %v1039 = vpop.f32.mrf.mxu0
  %1040 = vdwg.mxu0
  %v1041 = vmax.f32 %v1027, 0.0
  %v1042 = vmax.f32 %v1030, 0.0
  %v1043 = vmax.f32 %v1035, 0.0
  %v1044 = vmax.f32 %v1038, 0.0
  %v1045 = vpack.c.bf16 %v1042, %v1041
  %v1046 = vpack.c.bf16 %v1044, %v1043
  %s1047 = scalar_lea.vmem %s5, 32
  %v1048 = vld [vmem:[%s1047] sm:$0xf]
  %v1049 = vld [vmem:[%s1047 + $0x4] sm:$0xf]
  %v1050 = vld [vmem:[%s1047 + $0x8] sm:$0xf]
  %v1051 = vld [vmem:[%s1047 + $0xc] sm:$0xf]
  %s1052 = scalar_lea.vmem %s6, 64
  %v1053 = vld [vmem:[%s1052] sm:$0xff]
  %v1054 = vld [vmem:[%s1052 + $0x8] sm:$0xff]
  %v1055 = vld [vmem:[%s1052 + $0x10] sm:$0xff]
  %v1056 = vld [vmem:[%s1052 + $0x18] sm:$0xff]
  %1058 = vset.pattern.permute.xlu0 0
  %1059 = vperm.xlu0 %1058, %v1053
  %v1060 = vpop.permute.xlu0 %1059
  %1063 = vset.pattern.permute.xlu0 0
  %1064 = vperm.xlu0 %1063, %v1054
  %v1065 = vpop.permute.xlu0 %1064
  %1068 = vset.pattern.permute.xlu0 0
  %1069 = vperm.xlu0 %1068, %v1055
  %v1070 = vpop.permute.xlu0 %1069
  %1073 = vset.pattern.permute.xlu0 0
  %1074 = vperm.xlu0 %1073, %v1056
  %v1075 = vpop.permute.xlu0 %1074
  %v1081 = vunpack.c.l.b16 %v1048
  %v1082 = vunpack.c.l.b16 %v1049
  %v1083 = vunpack.c.l.b16 %v1050
  %v1084 = vunpack.c.l.b16 %v1051
  %v1085 = vpack.c.b16 %v1082, %v1081
  %v1086 = vpack.c.b16 %v1084, %v1083
  %v1088 = vsel %vm518, %v1085, 0
  %v1091 = vsel %vm518, %v1086, 0
  %1093 = vmatprep.subr.bf16.mxu0 0
  %1094 = vmatpush1.bf16.msra.mxu0 0
  %1095 = vmatprep.subr.bf16.mxu0 0
  %1096 = vmatpush1.bf16.msra.mxu0 0
  %1097 = vmatprep.subr.bf16.mxu0 0
  %1098 = vmatpush1.bf16.msra.mxu0 0
  %1099 = vmatprep.subr.bf16.mxu0 0
  %1100 = vmatpush1.bf16.msra.mxu0 0
  %1101 = vmatprep.subr.bf16.mxu0 0
  %1102 = vmatpush1.bf16.msra.mxu0 0
  %1103 = vmatprep.subr.bf16.mxu0 0
  %1104 = vmatpush1.bf16.msra.mxu0 0
  %1105 = vmatprep.subr.bf16.mxu0 0
  %1106 = vmatpush1.bf16.msra.mxu0 %v1046
  %1107 = vmatprep.subr.bf16.mxu0 0
  %1108 = vmatpush1.bf16.msra.mxu0 %v1045
  %1109 = vmatprep.subr.bf16.mxu0 0
  %1110 = vmatpush2.bf16.msra.mxu0 0
  %1111 = vmatprep.subr.bf16.mxu0 0
  %1112 = vmatpush2.bf16.msra.mxu0 0
  %1113 = vmatprep.subr.bf16.mxu0 0
  %1114 = vmatpush2.bf16.msra.mxu0 0
  %1115 = vmatprep.subr.bf16.mxu0 0
  %1116 = vmatpush2.bf16.msra.mxu0 0
  %1117 = vmatprep.subr.bf16.mxu0 0
  %1118 = vmatpush2.bf16.msra.mxu0 0
  %1119 = vmatprep.subr.bf16.mxu0 0
  %1120 = vmatpush2.bf16.msra.mxu0 0
  %1121 = vmatprep.subr.bf16.mxu0 0
  %1122 = vmatpush2.bf16.msra.mxu0 0
  %1123 = vmatprep.subr.bf16.mxu0 0
  %1124 = vmatpush2.bf16.msra.mxu0 0
  %1125 = vmatprep.mubr.bf16.mxu0 0
  %1126 = vmatmul.mubr.bf16.gmra.mxu0 %v1088
  %v1127 = vpop.f32.mrf.mxu0
  %v1128 = vadd.f32 %v1060, %v1127
  %v1129 = vpop.f32.mrf.mxu0
  %v1130 = vpop.f32.mrf.mxu0
  %v1131 = vadd.f32 %v1065, %v1130
  %v1132 = vpop.f32.mrf.mxu0
  %1133 = vmatprep.mubr.bf16.mxu0 0
  %1134 = vmatmul.mubr.bf16.gmra.mxu0 %v1091
  %v1135 = vpop.f32.mrf.mxu0
  %v1136 = vadd.f32 %v1070, %v1135
  %v1137 = vpop.f32.mrf.mxu0
  %v1138 = vpop.f32.mrf.mxu0
  %v1139 = vadd.f32 %v1075, %v1138
  %v1140 = vpop.f32.mrf.mxu0
  %1141 = vdwg.mxu0
  %v1142 = vmax.f32 %v1128, 0.0
  %v1143 = vmax.f32 %v1131, 0.0
  %v1144 = vmax.f32 %v1136, 0.0
  %v1145 = vmax.f32 %v1139, 0.0
  %v1146 = vpack.c.bf16 %v1143, %v1142
  %v1147 = vpack.c.bf16 %v1145, %v1144
  %s1148 = scalar_lea.vmem %s7, 32
  %v1149 = vld [vmem:[%s1148] sm:$0xf]
  %v1150 = vld [vmem:[%s1148 + $0x4] sm:$0xf]
  %v1151 = vld [vmem:[%s1148 + $0x8] sm:$0xf]
  %v1152 = vld [vmem:[%s1148 + $0xc] sm:$0xf]
  %s1153 = scalar_lea.vmem %s8, 64
  %v1154 = vld [vmem:[%s1153] sm:$0xff]
  %v1155 = vld [vmem:[%s1153 + $0x8] sm:$0xff]
  %v1156 = vld [vmem:[%s1153 + $0x10] sm:$0xff]
  %v1157 = vld [vmem:[%s1153 + $0x18] sm:$0xff]
  %1159 = vset.pattern.permute.xlu0 0
  %1160 = vperm.xlu0 %1159, %v1154
  %v1161 = vpop.permute.xlu0 %1160
  %1164 = vset.pattern.permute.xlu0 0
  %1165 = vperm.xlu0 %1164, %v1155
  %v1166 = vpop.permute.xlu0 %1165
  %1169 = vset.pattern.permute.xlu0 0
  %1170 = vperm.xlu0 %1169, %v1156
  %v1171 = vpop.permute.xlu0 %1170
  %1174 = vset.pattern.permute.xlu0 0
  %1175 = vperm.xlu0 %1174, %v1157
  %v1176 = vpop.permute.xlu0 %1175
  %v1182 = vunpack.c.l.b16 %v1149
  %v1183 = vunpack.c.l.b16 %v1150
  %v1184 = vunpack.c.l.b16 %v1151
  %v1185 = vunpack.c.l.b16 %v1152
  %v1186 = vpack.c.b16 %v1183, %v1182
  %v1187 = vpack.c.b16 %v1185, %v1184
  %v1189 = vsel %vm518, %v1186, 0
  %v1192 = vsel %vm518, %v1187, 0
  %1194 = vmatprep.subr.bf16.mxu0 0
  %1195 = vmatpush1.bf16.msra.mxu0 0
  %1196 = vmatprep.subr.bf16.mxu0 0
  %1197 = vmatpush1.bf16.msra.mxu0 0
  %1198 = vmatprep.subr.bf16.mxu0 0
  %1199 = vmatpush1.bf16.msra.mxu0 0
  %1200 = vmatprep.subr.bf16.mxu0 0
  %1201 = vmatpush1.bf16.msra.mxu0 0
  %1202 = vmatprep.subr.bf16.mxu0 0
  %1203 = vmatpush1.bf16.msra.mxu0 0
  %1204 = vmatprep.subr.bf16.mxu0 0
  %1205 = vmatpush1.bf16.msra.mxu0 0
  %1206 = vmatprep.subr.bf16.mxu0 0
  %1207 = vmatpush1.bf16.msra.mxu0 %v1147
  %1208 = vmatprep.subr.bf16.mxu0 0
  %1209 = vmatpush1.bf16.msra.mxu0 %v1146
  %1210 = vmatprep.subr.bf16.mxu0 0
  %1211 = vmatpush2.bf16.msra.mxu0 0
  %1212 = vmatprep.subr.bf16.mxu0 0
  %1213 = vmatpush2.bf16.msra.mxu0 0
  %1214 = vmatprep.subr.bf16.mxu0 0
  %1215 = vmatpush2.bf16.msra.mxu0 0
  %1216 = vmatprep.subr.bf16.mxu0 0
  %1217 = vmatpush2.bf16.msra.mxu0 0
  %1218 = vmatprep.subr.bf16.mxu0 0
  %1219 = vmatpush2.bf16.msra.mxu0 0
  %1220 = vmatprep.subr.bf16.mxu0 0
  %1221 = vmatpush2.bf16.msra.mxu0 0
  %1222 = vmatprep.subr.bf16.mxu0 0
  %1223 = vmatpush2.bf16.msra.mxu0 0
  %1224 = vmatprep.subr.bf16.mxu0 0
  %1225 = vmatpush2.bf16.msra.mxu0 0
  %1226 = vmatprep.mubr.bf16.mxu0 0
  %1227 = vmatmul.mubr.bf16.gmra.mxu0 %v1189
  %v1228 = vpop.f32.mrf.mxu0
  %v1229 = vadd.f32 %v1161, %v1228
  %v1230 = vpop.f32.mrf.mxu0
  %v1231 = vpop.f32.mrf.mxu0
  %v1232 = vadd.f32 %v1166, %v1231
  %v1233 = vpop.f32.mrf.mxu0
  %1234 = vmatprep.mubr.bf16.mxu0 0
  %1235 = vmatmul.mubr.bf16.gmra.mxu0 %v1192
  %v1236 = vpop.f32.mrf.mxu0
  %v1237 = vadd.f32 %v1171, %v1236
  %v1238 = vpop.f32.mrf.mxu0
  %v1239 = vpop.f32.mrf.mxu0
  %v1240 = vadd.f32 %v1176, %v1239
  %v1241 = vpop.f32.mrf.mxu0
  %1242 = vdwg.mxu0
  %v1243 = vtanh.pop %v1229
  %v1244 = vtanh.pop %v1232
  %v1245 = vmul.f32 %v1243, 0.1
  %v1246 = vmul.f32 %v1244, 0.1
  %v1247 = vmul.f32 %v1245, 1.442695
  %v1248 = vpow.pop %v1247
  %v1249 = vmul.f32 %v1246, 1.442695
  %v1250 = vpow.pop %v1249
  %v1251 = vmul.f32 %v683, %v1248
  %v1252 = vmul.f32 %v684, %v1250
  %v1253 = vadd.f32 %v1251, %v1237
  %v1254 = vadd.f32 %v1252, %v1240
  %s1255 = scalar_lea.vmem %s4, 48
  %v1256 = vld [vmem:[%s1255] sm:$0xf]
  %v1257 = vld [vmem:[%s1255 + $0x4] sm:$0xf]
  %v1258 = vld [vmem:[%s1255 + $0x8] sm:$0xf]
  %v1259 = vld [vmem:[%s1255 + $0xc] sm:$0xf]
  %v1260 = vpack.c.bf16 %v1254, %v1253
  %v1265 = vunpack.c.l.b16 %v1256
  %v1266 = vunpack.c.l.b16 %v1257
  %v1267 = vunpack.c.l.b16 %v1258
  %v1268 = vunpack.c.l.b16 %v1259
  %v1269 = vpack.c.b16 %v1266, %v1265
  %v1270 = vpack.c.b16 %v1268, %v1267
  %v1272 = vsel %vm282, %v1269, 0
  %v1275 = vsel %vm282, %v1270, 0
  %1277 = vmatprep.subr.bf16.mxu0 0
  %1278 = vmatpush1.bf16.msra.mxu0 0
  %1279 = vmatprep.subr.bf16.mxu0 0
  %1280 = vmatpush1.bf16.msra.mxu0 0
  %1281 = vmatprep.subr.bf16.mxu0 0
  %1282 = vmatpush1.bf16.msra.mxu0 0
  %1283 = vmatprep.subr.bf16.mxu0 0
  %1284 = vmatpush1.bf16.msra.mxu0 0
  %1285 = vmatprep.subr.bf16.mxu0 0
  %1286 = vmatpush1.bf16.msra.mxu0 0
  %1287 = vmatprep.subr.bf16.mxu0 0
  %1288 = vmatpush1.bf16.msra.mxu0 0
  %1289 = vmatprep.subr.bf16.mxu0 0
  %1290 = vmatpush1.bf16.msra.mxu0 0
  %1291 = vmatprep.subr.bf16.mxu0 0
  %1292 = vmatpush1.bf16.msra.mxu0 %v1260
  %1293 = vmatprep.subr.bf16.mxu0 0
  %1294 = vmatpush2.bf16.msra.mxu0 0
  %1295 = vmatprep.subr.bf16.mxu0 0
  %1296 = vmatpush2.bf16.msra.mxu0 0
  %1297 = vmatprep.subr.bf16.mxu0 0
  %1298 = vmatpush2.bf16.msra.mxu0 0
  %1299 = vmatprep.subr.bf16.mxu0 0
  %1300 = vmatpush2.bf16.msra.mxu0 0
  %1301 = vmatprep.subr.bf16.mxu0 0
  %1302 = vmatpush2.bf16.msra.mxu0 0
  %1303 = vmatprep.subr.bf16.mxu0 0
  %1304 = vmatpush2.bf16.msra.mxu0 0
  %1305 = vmatprep.subr.bf16.mxu0 0
  %1306 = vmatpush2.bf16.msra.mxu0 0
  %1307 = vmatprep.subr.bf16.mxu0 0
  %1308 = vmatpush2.bf16.msra.mxu0 0
  %1309 = vmatprep.mubr.bf16.mxu0 0
  %1310 = vmatmul.mubr.bf16.gmra.mxu0 %v1272
  %v1311 = vpop.f32.mrf.mxu0
  %v1312 = vadd.f32 %v390, %v1311
  %v1313 = vpop.f32.mrf.mxu0
  %v1314 = vpop.f32.mrf.mxu0
  %v1315 = vadd.f32 %v393, %v1314
  %v1316 = vpop.f32.mrf.mxu0
  %1317 = vmatprep.mubr.bf16.mxu0 0
  %1318 = vmatmul.mubr.bf16.gmra.mxu0 %v1275
  %v1319 = vpop.f32.mrf.mxu0
  %v1320 = vadd.f32 %v398, %v1319
  %v1321 = vpop.f32.mrf.mxu0
  %v1322 = vpop.f32.mrf.mxu0
  %v1323 = vadd.f32 %v401, %v1322
  %v1324 = vpop.f32.mrf.mxu0
  %1325 = vdwg.mxu0
  %v1326 = vmax.f32 %v1312, 0.0
  %v1327 = vmax.f32 %v1315, 0.0
  %v1328 = vmax.f32 %v1320, 0.0
  %v1329 = vmax.f32 %v1323, 0.0
  %v1330 = vpack.c.bf16 %v1327, %v1326
  %v1331 = vpack.c.bf16 %v1329, %v1328
  %s1332 = scalar_lea.vmem %s5, 48
  %v1333 = vld [vmem:[%s1332] sm:$0xf]
  %v1334 = vld [vmem:[%s1332 + $0x4] sm:$0xf]
  %v1335 = vld [vmem:[%s1332 + $0x8] sm:$0xf]
  %v1336 = vld [vmem:[%s1332 + $0xc] sm:$0xf]
  %s1337 = scalar_lea.vmem %s6, 96
  %v1338 = vld [vmem:[%s1337] sm:$0xff]
  %v1339 = vld [vmem:[%s1337 + $0x8] sm:$0xff]
  %v1340 = vld [vmem:[%s1337 + $0x10] sm:$0xff]
  %v1341 = vld [vmem:[%s1337 + $0x18] sm:$0xff]
  %1343 = vset.pattern.permute.xlu0 0
  %1344 = vperm.xlu0 %1343, %v1338
  %v1345 = vpop.permute.xlu0 %1344
  %1348 = vset.pattern.permute.xlu0 0
  %1349 = vperm.xlu0 %1348, %v1339
  %v1350 = vpop.permute.xlu0 %1349
  %1353 = vset.pattern.permute.xlu0 0
  %1354 = vperm.xlu0 %1353, %v1340
  %v1355 = vpop.permute.xlu0 %1354
  %1358 = vset.pattern.permute.xlu0 0
  %1359 = vperm.xlu0 %1358, %v1341
  %v1360 = vpop.permute.xlu0 %1359
  %v1366 = vunpack.c.l.b16 %v1333
  %v1367 = vunpack.c.l.b16 %v1334
  %v1368 = vunpack.c.l.b16 %v1335
  %v1369 = vunpack.c.l.b16 %v1336
  %v1370 = vpack.c.b16 %v1367, %v1366
  %v1371 = vpack.c.b16 %v1369, %v1368
  %v1373 = vsel %vm518, %v1370, 0
  %v1376 = vsel %vm518, %v1371, 0
  %1378 = vmatprep.subr.bf16.mxu0 0
  %1379 = vmatpush1.bf16.msra.mxu0 0
  %1380 = vmatprep.subr.bf16.mxu0 0
  %1381 = vmatpush1.bf16.msra.mxu0 0
  %1382 = vmatprep.subr.bf16.mxu0 0
  %1383 = vmatpush1.bf16.msra.mxu0 0
  %1384 = vmatprep.subr.bf16.mxu0 0
  %1385 = vmatpush1.bf16.msra.mxu0 0
  %1386 = vmatprep.subr.bf16.mxu0 0
  %1387 = vmatpush1.bf16.msra.mxu0 0
  %1388 = vmatprep.subr.bf16.mxu0 0
  %1389 = vmatpush1.bf16.msra.mxu0 0
  %1390 = vmatprep.subr.bf16.mxu0 0
  %1391 = vmatpush1.bf16.msra.mxu0 %v1331
  %1392 = vmatprep.subr.bf16.mxu0 0
  %1393 = vmatpush1.bf16.msra.mxu0 %v1330
  %1394 = vmatprep.subr.bf16.mxu0 0
  %1395 = vmatpush2.bf16.msra.mxu0 0
  %1396 = vmatprep.subr.bf16.mxu0 0
  %1397 = vmatpush2.bf16.msra.mxu0 0
  %1398 = vmatprep.subr.bf16.mxu0 0
  %1399 = vmatpush2.bf16.msra.mxu0 0
  %1400 = vmatprep.subr.bf16.mxu0 0
  %1401 = vmatpush2.bf16.msra.mxu0 0
  %1402 = vmatprep.subr.bf16.mxu0 0
  %1403 = vmatpush2.bf16.msra.mxu0 0
  %1404 = vmatprep.subr.bf16.mxu0 0
  %1405 = vmatpush2.bf16.msra.mxu0 0
  %1406 = vmatprep.subr.bf16.mxu0 0
  %1407 = vmatpush2.bf16.msra.mxu0 0
  %1408 = vmatprep.subr.bf16.mxu0 0
  %1409 = vmatpush2.bf16.msra.mxu0 0
  %1410 = vmatprep.mubr.bf16.mxu0 0
  %1411 = vmatmul.mubr.bf16.gmra.mxu0 %v1373
  %v1412 = vpop.f32.mrf.mxu0
  %v1413 = vadd.f32 %v1345, %v1412
  %v1414 = vpop.f32.mrf.mxu0
  %v1415 = vpop.f32.mrf.mxu0
  %v1416 = vadd.f32 %v1350, %v1415
  %v1417 = vpop.f32.mrf.mxu0
  %1418 = vmatprep.mubr.bf16.mxu0 0
  %1419 = vmatmul.mubr.bf16.gmra.mxu0 %v1376
  %v1420 = vpop.f32.mrf.mxu0
  %v1421 = vadd.f32 %v1355, %v1420
  %v1422 = vpop.f32.mrf.mxu0
  %v1423 = vpop.f32.mrf.mxu0
  %v1424 = vadd.f32 %v1360, %v1423
  %v1425 = vpop.f32.mrf.mxu0
  %1426 = vdwg.mxu0
  %v1427 = vmax.f32 %v1413, 0.0
  %v1428 = vmax.f32 %v1416, 0.0
  %v1429 = vmax.f32 %v1421, 0.0
  %v1430 = vmax.f32 %v1424, 0.0
  %v1431 = vpack.c.bf16 %v1428, %v1427
  %v1432 = vpack.c.bf16 %v1430, %v1429
  %s1433 = scalar_lea.vmem %s7, 48
  %v1434 = vld [vmem:[%s1433] sm:$0xf]
  %v1435 = vld [vmem:[%s1433 + $0x4] sm:$0xf]
  %v1436 = vld [vmem:[%s1433 + $0x8] sm:$0xf]
  %v1437 = vld [vmem:[%s1433 + $0xc] sm:$0xf]
  %s1438 = scalar_lea.vmem %s8, 96
  %v1439 = vld [vmem:[%s1438] sm:$0xff]
  %v1440 = vld [vmem:[%s1438 + $0x8] sm:$0xff]
  %v1441 = vld [vmem:[%s1438 + $0x10] sm:$0xff]
  %v1442 = vld [vmem:[%s1438 + $0x18] sm:$0xff]
  %1444 = vset.pattern.permute.xlu0 0
  %1445 = vperm.xlu0 %1444, %v1439
  %v1446 = vpop.permute.xlu0 %1445
  %1449 = vset.pattern.permute.xlu0 0
  %1450 = vperm.xlu0 %1449, %v1440
  %v1451 = vpop.permute.xlu0 %1450
  %1454 = vset.pattern.permute.xlu0 0
  %1455 = vperm.xlu0 %1454, %v1441
  %v1456 = vpop.permute.xlu0 %1455
  %1459 = vset.pattern.permute.xlu0 0
  %1460 = vperm.xlu0 %1459, %v1442
  %v1461 = vpop.permute.xlu0 %1460
  %v1467 = vunpack.c.l.b16 %v1434
  %v1468 = vunpack.c.l.b16 %v1435
  %v1469 = vunpack.c.l.b16 %v1436
  %v1470 = vunpack.c.l.b16 %v1437
  %v1471 = vpack.c.b16 %v1468, %v1467
  %v1472 = vpack.c.b16 %v1470, %v1469
  %v1474 = vsel %vm518, %v1471, 0
  %v1477 = vsel %vm518, %v1472, 0
  %1479 = vmatprep.subr.bf16.mxu0 0
  %1480 = vmatpush1.bf16.msra.mxu0 0
  %1481 = vmatprep.subr.bf16.mxu0 0
  %1482 = vmatpush1.bf16.msra.mxu0 0
  %1483 = vmatprep.subr.bf16.mxu0 0
  %1484 = vmatpush1.bf16.msra.mxu0 0
  %1485 = vmatprep.subr.bf16.mxu0 0
  %1486 = vmatpush1.bf16.msra.mxu0 0
  %1487 = vmatprep.subr.bf16.mxu0 0
  %1488 = vmatpush1.bf16.msra.mxu0 0
  %1489 = vmatprep.subr.bf16.mxu0 0
  %1490 = vmatpush1.bf16.msra.mxu0 0
  %1491 = vmatprep.subr.bf16.mxu0 0
  %1492 = vmatpush1.bf16.msra.mxu0 %v1432
  %1493 = vmatprep.subr.bf16.mxu0 0
  %1494 = vmatpush1.bf16.msra.mxu0 %v1431
  %1495 = vmatprep.subr.bf16.mxu0 0
  %1496 = vmatpush2.bf16.msra.mxu0 0
  %1497 = vmatprep.subr.bf16.mxu0 0
  %1498 = vmatpush2.bf16.msra.mxu0 0
  %1499 = vmatprep.subr.bf16.mxu0 0
  %1500 = vmatpush2.bf16.msra.mxu0 0
  %1501 = vmatprep.subr.bf16.mxu0 0
  %1502 = vmatpush2.bf16.msra.mxu0 0
  %1503 = vmatprep.subr.bf16.mxu0 0
  %1504 = vmatpush2.bf16.msra.mxu0 0
  %1505 = vmatprep.subr.bf16.mxu0 0
  %1506 = vmatpush2.bf16.msra.mxu0 0
  %1507 = vmatprep.subr.bf16.mxu0 0
  %1508 = vmatpush2.bf16.msra.mxu0 0
  %1509 = vmatprep.subr.bf16.mxu0 0
  %1510 = vmatpush2.bf16.msra.mxu0 0
  %1511 = vmatprep.mubr.bf16.mxu0 0
  %1512 = vmatmul.mubr.bf16.gmra.mxu0 %v1474
  %v1513 = vpop.f32.mrf.mxu0
  %v1514 = vadd.f32 %v1446, %v1513
  %v1515 = vpop.f32.mrf.mxu0
  %v1516 = vpop.f32.mrf.mxu0
  %v1517 = vadd.f32 %v1451, %v1516
  %v1518 = vpop.f32.mrf.mxu0
  %1519 = vmatprep.mubr.bf16.mxu0 0
  %1520 = vmatmul.mubr.bf16.gmra.mxu0 %v1477
  %v1521 = vpop.f32.mrf.mxu0
  %v1522 = vadd.f32 %v1456, %v1521
  %v1523 = vpop.f32.mrf.mxu0
  %v1524 = vpop.f32.mrf.mxu0
  %v1525 = vadd.f32 %v1461, %v1524
  %v1526 = vpop.f32.mrf.mxu0
  %1527 = vdwg.mxu0
  %v1528 = vtanh.pop %v1514
  %v1529 = vtanh.pop %v1517
  %v1530 = vmul.f32 %v1528, 0.1
  %v1531 = vmul.f32 %v1529, 0.1
  %v1532 = vmul.f32 %v1530, 1.442695
  %v1533 = vpow.pop %v1532
  %v1534 = vmul.f32 %v1531, 1.442695
  %v1535 = vpow.pop %v1534
  %v1536 = vmul.f32 %v968, %v1533
  %v1537 = vmul.f32 %v969, %v1535
  %v1538 = vadd.f32 %v1536, %v1522
  %v1539 = vadd.f32 %v1537, %v1525
  %1540 = vxpose.xlu0.b32.start [1/16] %v1253, 128
  %1541 = vxpose.xlu0.b32.cont [2/16] %v1254, 128
  %1542 = vxpose.xlu0.b32.cont [3/16] 0.0, 128
  %1543 = vxpose.xlu0.b32.cont [4/16] 0.0, 128
  %1544 = vxpose.xlu0.b32.cont [5/16] 0.0, 128
  %1545 = vxpose.xlu0.b32.cont [6/16] 0.0, 128
  %1546 = vxpose.xlu0.b32.cont [7/16] 0.0, 128
  %1547 = vxpose.xlu0.b32.cont [8/16] 0.0, 128
  %1548 = vxpose.xlu0.b32.cont [9/16] 0.0, 128
  %1549 = vxpose.xlu0.b32.cont [10/16] 0.0, 128
  %1550 = vxpose.xlu0.b32.cont [11/16] 0.0, 128
  %1551 = vxpose.xlu0.b32.cont [12/16] 0.0, 128
  %1552 = vxpose.xlu0.b32.cont [13/16] 0.0, 128
  %1553 = vxpose.xlu0.b32.cont [14/16] 0.0, 128
  %1554 = vxpose.xlu0.b32.cont [15/16] 0.0, 128
  %1555 = vxpose.xlu0.b32.end [16/16] 0.0, 128
  %v1556 = vpop.trf.xlu0
  %v1557 = vpop.trf.xlu0
  %v1558 = vpop.trf.xlu0
  %v1559 = vpop.trf.xlu0
  %v1560 = vpop.trf.xlu0
  %v1561 = vpop.trf.xlu0
  %v1562 = vpop.trf.xlu0
  %v1563 = vpop.trf.xlu0
  %v1564 = vpop.trf.xlu0
  %v1565 = vpop.trf.xlu0
  %v1566 = vpop.trf.xlu0
  %v1567 = vpop.trf.xlu0
  %v1568 = vpop.trf.xlu0
  %v1569 = vpop.trf.xlu0
  %v1570 = vpop.trf.xlu0
  %v1571 = vpop.trf.xlu0
  %1572 = vst.msk [vmem:[%s9] sm:$0xff] %vm282, %v1556
  %1573 = vst.msk [vmem:[%s9 + $0x8] sm:$0xff] %vm282, %v1557
  %1574 = vst.msk [vmem:[%s9 + $0x10] sm:$0xff] %vm282, %v1558
  %1575 = vst.msk [vmem:[%s9 + $0x18] sm:$0xff] %vm282, %v1559
  %1576 = vst.msk [vmem:[%s9 + $0x20] sm:$0xff] %vm282, %v1560
  %1577 = vst.msk [vmem:[%s9 + $0x28] sm:$0xff] %vm282, %v1561
  %1578 = vst.msk [vmem:[%s9 + $0x30] sm:$0xff] %vm282, %v1562
  %1579 = vst.msk [vmem:[%s9 + $0x38] sm:$0xff] %vm282, %v1563
  %1580 = vst.msk [vmem:[%s9 + $0x40] sm:$0xff] %vm282, %v1564
  %1581 = vst.msk [vmem:[%s9 + $0x48] sm:$0xff] %vm282, %v1565
  %1582 = vst.msk [vmem:[%s9 + $0x50] sm:$0xff] %vm282, %v1566
  %1583 = vst.msk [vmem:[%s9 + $0x58] sm:$0xff] %vm282, %v1567
  %1584 = vst.msk [vmem:[%s9 + $0x60] sm:$0xff] %vm282, %v1568
  %1585 = vst.msk [vmem:[%s9 + $0x68] sm:$0xff] %vm282, %v1569
  %1586 = vst.msk [vmem:[%s9 + $0x70] sm:$0xff] %vm282, %v1570
  %1587 = vst.msk [vmem:[%s9 + $0x78] sm:$0xff] %vm282, %v1571
  %1588 = vxpose.xlu0.b32.start [1/16] %v1538, 128
  %1589 = vxpose.xlu0.b32.cont [2/16] %v1539, 128
  %1590 = vxpose.xlu0.b32.cont [3/16] 0.0, 128
  %1591 = vxpose.xlu0.b32.cont [4/16] 0.0, 128
  %1592 = vxpose.xlu0.b32.cont [5/16] 0.0, 128
  %1593 = vxpose.xlu0.b32.cont [6/16] 0.0, 128
  %1594 = vxpose.xlu0.b32.cont [7/16] 0.0, 128
  %1595 = vxpose.xlu0.b32.cont [8/16] 0.0, 128
  %1596 = vxpose.xlu0.b32.cont [9/16] 0.0, 128
  %1597 = vxpose.xlu0.b32.cont [10/16] 0.0, 128
  %1598 = vxpose.xlu0.b32.cont [11/16] 0.0, 128
  %1599 = vxpose.xlu0.b32.cont [12/16] 0.0, 128
  %1600 = vxpose.xlu0.b32.cont [13/16] 0.0, 128
  %1601 = vxpose.xlu0.b32.cont [14/16] 0.0, 128
  %1602 = vxpose.xlu0.b32.cont [15/16] 0.0, 128
  %1603 = vxpose.xlu0.b32.end [16/16] 0.0, 128
  %v1604 = vpop.trf.xlu0
  %v1605 = vpop.trf.xlu0
  %v1606 = vpop.trf.xlu0
  %v1607 = vpop.trf.xlu0
  %v1608 = vpop.trf.xlu0
  %v1609 = vpop.trf.xlu0
  %v1610 = vpop.trf.xlu0
  %v1611 = vpop.trf.xlu0
  %v1612 = vpop.trf.xlu0
  %v1613 = vpop.trf.xlu0
  %v1614 = vpop.trf.xlu0
  %v1615 = vpop.trf.xlu0
  %v1616 = vpop.trf.xlu0
  %v1617 = vpop.trf.xlu0
  %v1618 = vpop.trf.xlu0
  %v1619 = vpop.trf.xlu0
  %1636 = vrot.lane.b32.xlu0 %v1604, 16
  %v1637 = vpop.permute.xlu0 %1636
  %1638 = vrot.lane.b32.xlu0 %v1605, 16
  %v1639 = vpop.permute.xlu0 %1638
  %1640 = vrot.lane.b32.xlu0 %v1606, 16
  %v1641 = vpop.permute.xlu0 %1640
  %1642 = vrot.lane.b32.xlu0 %v1607, 16
  %v1643 = vpop.permute.xlu0 %1642
  %1644 = vrot.lane.b32.xlu0 %v1608, 16
  %v1645 = vpop.permute.xlu0 %1644
  %1646 = vrot.lane.b32.xlu0 %v1609, 16
  %v1647 = vpop.permute.xlu0 %1646
  %1648 = vrot.lane.b32.xlu0 %v1610, 16
  %v1649 = vpop.permute.xlu0 %1648
  %1650 = vrot.lane.b32.xlu0 %v1611, 16
  %v1651 = vpop.permute.xlu0 %1650
  %1652 = vrot.lane.b32.xlu0 %v1612, 16
  %v1653 = vpop.permute.xlu0 %1652
  %1654 = vrot.lane.b32.xlu0 %v1613, 16
  %v1655 = vpop.permute.xlu0 %1654
  %1656 = vrot.lane.b32.xlu0 %v1614, 16
  %v1657 = vpop.permute.xlu0 %1656
  %1658 = vrot.lane.b32.xlu0 %v1615, 16
  %v1659 = vpop.permute.xlu0 %1658
  %1660 = vrot.lane.b32.xlu0 %v1616, 16
  %v1661 = vpop.permute.xlu0 %1660
  %1662 = vrot.lane.b32.xlu0 %v1617, 16
  %v1663 = vpop.permute.xlu0 %1662
  %1664 = vrot.lane.b32.xlu0 %v1618, 16
  %v1665 = vpop.permute.xlu0 %1664
  %1666 = vrot.lane.b32.xlu0 %v1619, 16
  %v1667 = vpop.permute.xlu0 %1666
  %vm1684 = vcmask 261248
  %1685 = vst.msk [vmem:[%s9] sm:$0xff] %vm1684, %v1637
  %1686 = vst.msk [vmem:[%s9 + $0x8] sm:$0xff] %vm1684, %v1639
  %1687 = vst.msk [vmem:[%s9 + $0x10] sm:$0xff] %vm1684, %v1641
  %1688 = vst.msk [vmem:[%s9 + $0x18] sm:$0xff] %vm1684, %v1643
  %1689 = vst.msk [vmem:[%s9 + $0x20] sm:$0xff] %vm1684, %v1645
  %1690 = vst.msk [vmem:[%s9 + $0x28] sm:$0xff] %vm1684, %v1647
  %1691 = vst.msk [vmem:[%s9 + $0x30] sm:$0xff] %vm1684, %v1649
  %1692 = vst.msk [vmem:[%s9 + $0x38] sm:$0xff] %vm1684, %v1651
  %1693 = vst.msk [vmem:[%s9 + $0x40] sm:$0xff] %vm1684, %v1653
  %1694 = vst.msk [vmem:[%s9 + $0x48] sm:$0xff] %vm1684, %v1655
  %1695 = vst.msk [vmem:[%s9 + $0x50] sm:$0xff] %vm1684, %v1657
  %1696 = vst.msk [vmem:[%s9 + $0x58] sm:$0xff] %vm1684, %v1659
  %1697 = vst.msk [vmem:[%s9 + $0x60] sm:$0xff] %vm1684, %v1661
  %1698 = vst.msk [vmem:[%s9 + $0x68] sm:$0xff] %vm1684, %v1663
  %1699 = vst.msk [vmem:[%s9 + $0x70] sm:$0xff] %vm1684, %v1665
  %1700 = vst.msk [vmem:[%s9 + $0x78] sm:$0xff] %vm1684, %v1667
  // Predicated region
  $region38: #{nf_forward_pallas.1} parent=0 // pred_check
    _
  $region39: #{nf_forward_pallas.1} parent=0 // pred_check_branch
    %1702 = sbr.rel (0) target = $region41
  $region40: #{nf_forward_pallas.1} parent=0 // pred_region
    _
  $region41: #{nf_forward_pallas.1} parent=0 // pred_fallthru
    _
  // Predicated region
  $region42: #{nf_forward_pallas.1} parent=0 // pred_check
    _
  $region43: #{nf_forward_pallas.1} parent=0 // pred_check_branch
    %1704 = sbr.rel (0) target = $region45
  $region44: #{nf_forward_pallas.1} parent=0 // pred_region
    _
  $region45: #{nf_forward_pallas.1} parent=0 // pred_fallthru
    _

</llo_original>
